<compile_context>
chip_gen: v5e
topology: v5e:2x2
jax: 0.10.0
libtpu: 0.0.40
codegen_flags: <defaults>
</compile_context>

<pallas_src>
import jax
import jax.numpy as jnp
from jax.experimental import pallas as pl
from jax.experimental.pallas import tpu as pltpu


# --------------------------------------------------------------------------
# Pallas kernel
# --------------------------------------------------------------------------
def _make_kernel(num_layers, hidden_size, enc_hidden, emb_size, src_len, vocab,
                 in_sizes):
    L, H, H_ENC, E, S, V = num_layers, hidden_size, enc_hidden, emb_size, src_len, vocab
    OUT_B_ROW = 2 + 4 * L  # row index of out_b in the bias slab

    def kernel(emb_ref, hid_ref, enc_ref,
               attn_we_ref, attn_wh_ref,
               comb_we_ref, comb_wa_ref,
               w_ih_ref, w_hh_ref, bias_ref, out_wT_ref,
               logp_ref, hid_out_ref, attnw_ref):
        f32 = jnp.float32
        emb = emb_ref[...]                         # [B, E] (dropout == identity)
        h0 = hid_ref[0]                            # [B, H] (hidden[0], as in torch)

        # ---- attention weights: softmax(emb@We + h0@Wh + b) -----------------
        attn_logits = (jnp.dot(emb, attn_we_ref[...], preferred_element_type=f32)
                       + jnp.dot(h0, attn_wh_ref[...], preferred_element_type=f32)
                       + bias_ref[0:1, :S])                         # [B, S]
        m = jnp.max(attn_logits, axis=1, keepdims=True)
        e = jnp.exp(attn_logits - m)
        denom = jnp.sum(e, axis=1, keepdims=True)
        attn_w = e * pl.reciprocal(denom, approx=False)             # exact
        attnw_ref[...] = attn_w

        # ---- apply attention on the MXU: out[b,h] = sum_s w[b,s] enc[b,s,h] --
        enc = enc_ref[...]                                          # [B, S, H_ENC]
        attn_applied = jnp.einsum(
            "bks,bsh->bkh", attn_w[:, None, :], enc,
            preferred_element_type=f32)[:, 0, :]                    # [B, H_ENC]

        # ---- attn_combine + relu (split weights, no concat) ------------------
        x = (jnp.dot(emb, comb_we_ref[...], preferred_element_type=f32)
             + jnp.dot(attn_applied, comb_wa_ref[...], preferred_element_type=f32)
             + bias_ref[1:2, :H_ENC])
        x = jnp.maximum(x, 0.0)

        # ---- multi-layer GRU cell, single step (PyTorch gate order r, z, n) --
        for layer in range(L):
            h_prev = hid_ref[layer]                                 # [B, H]
            in_l = in_sizes[layer]

            def gi(g):
                w = w_ih_ref[layer, g]                              # [IN_MAX, H]
                if in_l != w.shape[0]:
                    w = w[:in_l, :]
                return jnp.dot(x, w, preferred_element_type=f32)

            def gh(g):
                return jnp.dot(h_prev, w_hh_ref[layer, g],
                               preferred_element_type=f32)

            row = 2 + 4 * layer
            b_r = bias_ref[row + 0:row + 1, :H]    # b_ih_r + b_hh_r (pre-summed)
            b_z = bias_ref[row + 1:row + 2, :H]    # b_ih_z + b_hh_z (pre-summed)
            b_in = bias_ref[row + 2:row + 3, :H]   # b_ih_n
            b_hn = bias_ref[row + 3:row + 4, :H]   # b_hh_n

            r = jax.nn.sigmoid(gi(0) + gh(0) + b_r)
            z = jax.nn.sigmoid(gi(1) + gh(1) + b_z)
            n = jnp.tanh(gi(2) + b_in + r * (gh(2) + b_hn))
            h_new = (1.0 - z) * n + z * h_prev
            hid_out_ref[layer] = h_new
            x = h_new

        # ---- output projection + log_softmax ---------------------------------
        logits = (jnp.dot(x, out_wT_ref[...], preferred_element_type=f32)
                  + bias_ref[OUT_B_ROW:OUT_B_ROW + 1, :V])          # [B, V]
        mo = jnp.max(logits, axis=1, keepdims=True)
        s = logits - mo
        lse = jnp.log(jnp.sum(jnp.exp(s), axis=1, keepdims=True))
        logp_ref[...] = s - lse

    return kernel


# --------------------------------------------------------------------------
# Wrapper (weight re-packing would normally be done once, outside the decode loop)
# --------------------------------------------------------------------------
def attn_decoder_forward(params, input_ids, hidden, encoder_outputs):
    """
    input_ids:        [1, B] int32
    hidden:           [L, B, H_dec] float32
    encoder_outputs:  [S, B, H_enc] float32   (PyTorch seq-major layout)
    Returns (log_probs [B, V], hidden_out [L, B, H_dec], attn_weights [B, S]).
    """
    L, B, H = hidden.shape
    S, _, H_enc = encoder_outputs.shape
    V, E = params["embedding"].shape
    IN_SIZES = [H_enc] + [H] * (L - 1)       # GRU per-layer input widths
    IN_MAX = max(IN_SIZES)
    BIAS_W = max(S, H_enc, H, V)

    # Glue: embedding gather + layout transpose stay in plain JAX.
    emb = params["embedding"][input_ids[0]]                      # [B, E]
    enc_bsh = jnp.transpose(encoder_outputs, (1, 0, 2))          # [B, S, H_enc]

    # Split attn / attn_combine weights so the kernel never concatenates along
    # the lane axis:  y = a @ W_a + b @ W_b + bias.
    attn_w = params["attn_w"]                                    # [S, E+H]
    attn_we, attn_wh = attn_w[:, :E].T, attn_w[:, E:].T          # [E,S], [H,S]
    comb_w = params["comb_w"]                                    # [H_enc, E+H_enc]
    comb_we, comb_wa = comb_w[:, :E].T, comb_w[:, E:].T          # [E,H_enc], [H_enc,H_enc]
    out_wT = params["out_w"].T                                   # [H, V]

    # Per-gate GRU weight slabs stacked over layers -> 2 inputs instead of 4*L,
    # and no lane slicing of gate outputs inside the kernel.
    def per_gate_ih(w, in_size):                                 # w: [3H, in]
        slabs = []
        for g in range(3):
            wg = w[g * H:(g + 1) * H, :].T                       # [in, H]
            if in_size < IN_MAX:
                wg = jnp.pad(wg, ((0, IN_MAX - in_size), (0, 0)))
            slabs.append(wg)
        return jnp.stack(slabs, axis=0)                          # [3, IN_MAX, H]

    w_ih_stack = jnp.stack(
        [per_gate_ih(params["gru_w_ih"][l], IN_SIZES[l]) for l in range(L)], 0)
    w_hh_stack = jnp.stack(
        [jnp.stack([params["gru_w_hh"][l][g * H:(g + 1) * H, :].T
                    for g in range(3)], 0) for l in range(L)], 0)  # [L, 3, H, H]

    # One bias per sublane row (lane offset 0 -> no lane shifts in-kernel).
    def row(b):
        b = b.reshape(1, -1)
        return jnp.pad(b, ((0, 0), (0, BIAS_W - b.shape[1])))

    rows = [row(params["attn_b"]), row(params["comb_b"])]
    for l in range(L):
        b_ih, b_hh = params["gru_b_ih"][l], params["gru_b_hh"][l]
        rows += [row(b_ih[:H] + b_hh[:H]),            # r-gate bias (pre-summed)
                 row(b_ih[H:2 * H] + b_hh[H:2 * H]),  # z-gate bias (pre-summed)
                 row(b_ih[2 * H:]),                   # n-gate input bias
                 row(b_hh[2 * H:])]                   # n-gate hidden bias
    rows.append(row(params["out_b"]))
    bias_slab = jnp.concatenate(rows, axis=0)         # [3 + 4L, BIAS_W]

    inputs = [emb, hidden, enc_bsh, attn_we, attn_wh, comb_we, comb_wa,
              w_ih_stack, w_hh_stack, bias_slab, out_wT]

    vmem = pl.BlockSpec(memory_space=pltpu.MemorySpace.VMEM)
    out_shape = (
        jax.ShapeDtypeStruct((B, V), jnp.float32),            # log_probs
        jax.ShapeDtypeStruct((L, B, H), jnp.float32),         # new hidden
        jax.ShapeDtypeStruct((B, S), jnp.float32),            # attn weights
    )

    # Advisory cost estimate so XLA schedules the surrounding gather/transpose
    # around the (tiny) custom call.
    gru_flops = sum(2 * B * 3 * H * (IN_SIZES[l] + H) for l in range(L))
    flops = (2 * B * S * (E + H) + 2 * B * S * H_enc
             + 2 * B * H_enc * (E + H_enc) + gru_flops + 2 * B * H * V)
    transcendentals = B * S + B * V + 3 * L * B * H + B
    bytes_accessed = 4 * (sum(int(x.size) for x in inputs)
                          + B * V + L * B * H + B * S)

    kernel = _make_kernel(L, H, H_enc, E, S, V, IN_SIZES)
    logp, hid_out, attn_weights = pl.pallas_call(
        kernel,
        out_shape=out_shape,
        in_specs=[vmem] * len(inputs),
        out_specs=(vmem, vmem, vmem),
        cost_estimate=pl.CostEstimate(flops=flops,
                                      transcendentals=transcendentals,
                                      bytes_accessed=bytes_accessed),
        compiler_params=pltpu.CompilerParams(vmem_limit_bytes=16 * 1024 * 1024),
    )(*inputs)
    return logp, hid_out, attn_weights


# --------------------------------------------------------------------------
# Pure-JAX reference (mirrors the PyTorch forward, eval-mode dropout)
# --------------------------------------------------------------------------
def reference_forward(params, input_ids, hidden, encoder_outputs):
    L, B, H_dec = hidden.shape
    emb = params["embedding"][input_ids[0]]
    attn_in = jnp.concatenate([emb, hidden[0]], axis=1)
    attn_w = jax.nn.softmax(attn_in @ params["attn_w"].T + params["attn_b"], axis=1)
    enc_bhs = jnp.transpose(encoder_outputs, (1, 2, 0))          # [B, H_enc, S]
    attn_applied = jnp.einsum("bhs,bs->bh", enc_bhs, attn_w)
    comb_in = jnp.concatenate([emb, attn_applied], axis=1)
    x = jax.nn.relu(comb_in @ params["comb_w"].T + params["comb_b"])
    H = H_dec
    new_hidden = []
    for layer in range(L):
        h_prev = hidden[layer]
        gi = x @ params["gru_w_ih"][layer].T + params["gru_b_ih"][layer]
        gh = h_prev @ params["gru_w_hh"][layer].T + params["gru_b_hh"][layer]
        r = jax.nn.sigmoid(gi[:, :H] + gh[:, :H])
        z = jax.nn.sigmoid(gi[:, H:2 * H] + gh[:, H:2 * H])
        n = jnp.tanh(gi[:, 2 * H:] + r * gh[:, 2 * H:])
        h_new = (1.0 - z) * n + z * h_prev
        new_hidden.append(h_new)
        x = h_new
    logits = x @ params["out_w"].T + params["out_b"]
    logp = jax.nn.log_softmax(logits, axis=1)
    return logp, jnp.stack(new_hidden, axis=0), attn_w


# --------------------------------------------------------------------------
# Main
# --------------------------------------------------------------------------
if __name__ == "__main__":
    B = 8            # batch_size
    E = 32           # embedding_size
    H_DEC = 32       # decoder_hidden_size (== gru.hidden_size)
    H_ENC = 32       # encoder_hidden_size
    S = 16           # max_src_length
    L = 2            # num_hidden_layers
    V = 64           # output_size (vocab)

    key = jax.random.PRNGKey(0)
    keys = jax.random.split(key, 16)

    def uni(k, shape, fan_in):
        bound = 1.0 / jnp.sqrt(float(fan_in))
        return jax.random.uniform(k, shape, jnp.float32, -bound, bound)

    params = {
        "embedding": jax.random.normal(keys[0], (V, E), jnp.float32),
        "attn_w": uni(keys[1], (S, E + H_DEC), E + H_DEC),
        "attn_b": uni(keys[2], (S,), E + H_DEC),
        "comb_w": uni(keys[3], (H_ENC, E + H_ENC), E + H_ENC),
        "comb_b": uni(keys[4], (H_ENC,), E + H_ENC),
        # GRU: layer 0 input = H_ENC, layers >0 input = H_DEC (here equal).
        "gru_w_ih": [uni(keys[5], (3 * H_DEC, H_ENC), H_DEC),
                     uni(keys[6], (3 * H_DEC, H_DEC), H_DEC)],
        "gru_w_hh": [uni(keys[7], (3 * H_DEC, H_DEC), H_DEC),
                     uni(keys[8], (3 * H_DEC, H_DEC), H_DEC)],
        "gru_b_ih": [uni(keys[9], (3 * H_DEC,), H_DEC),
                     uni(keys[10], (3 * H_DEC,), H_DEC)],
        "gru_b_hh": [uni(keys[11], (3 * H_DEC,), H_DEC),
                     uni(keys[12], (3 * H_DEC,), H_DEC)],
        "out_w": uni(keys[13], (V, H_DEC), H_DEC),
        "out_b": uni(keys[14], (V,), H_DEC),
    }

    input_ids = jax.random.randint(keys[15], (1, B), 0, V, dtype=jnp.int32)
    hidden = jnp.zeros((L, B, H_DEC), jnp.float32)
    encoder_outputs = jax.random.normal(jax.random.PRNGKey(42), (S, B, H_ENC),
                                        jnp.float32)

    logp, hidden_out, attn_w = attn_decoder_forward(
        params, input_ids, hidden, encoder_outputs)
    jax.block_until_ready((logp, hidden_out, attn_w))

    # Correctness check against pure-JAX reference.
    r_logp, r_hidden, r_attn = reference_forward(
        params, input_ids, hidden, encoder_outputs)
    assert logp.shape == (B, V) and hidden_out.shape == (L, B, H_DEC) \
        and attn_w.shape == (B, S)
    # Attention weights use identical operands on both sides -> tight check.
    assert jnp.allclose(attn_w, r_attn, atol=1e-5, rtol=1e-5)
    # logp / hidden: the kernel now routes the attention contraction through
    # the MXU (default TPU f32 matmul precision = bf16 passes), while XLA may
    # compute the reference contraction differently, so allow ~1e-3.
    assert jnp.allclose(logp, r_logp, atol=1e-3, rtol=1e-3)
    assert jnp.allclose(hidden_out, r_hidden, atol=1e-3, rtol=1e-3)

    print("KERNEL_OK")
</pallas_src>

<mosaic_0001>
module attributes {stable_mosaic.version = 11 : i64} {
  func.func @kernel(%arg0: memref<8x32xf32, #tpu.memory_space<vmem>>, %arg1: memref<2x8x32xf32, #tpu.memory_space<vmem>>, %arg2: memref<8x16x32xf32, #tpu.memory_space<vmem>>, %arg3: memref<32x16xf32, #tpu.memory_space<vmem>>, %arg4: memref<32x16xf32, #tpu.memory_space<vmem>>, %arg5: memref<32x32xf32, #tpu.memory_space<vmem>>, %arg6: memref<32x32xf32, #tpu.memory_space<vmem>>, %arg7: memref<2x3x32x32xf32, #tpu.memory_space<vmem>>, %arg8: memref<2x3x32x32xf32, #tpu.memory_space<vmem>>, %arg9: memref<11x64xf32, #tpu.memory_space<vmem>>, %arg10: memref<32x64xf32, #tpu.memory_space<vmem>>, %arg11: memref<8x64xf32, #tpu.memory_space<vmem>>, %arg12: memref<2x8x32xf32, #tpu.memory_space<vmem>>, %arg13: memref<8x16xf32, #tpu.memory_space<vmem>>) attributes {dimension_semantics = [], scalar_prefetch = 0 : i64, scratch_operands = 0 : i64, tpu.core_type = #tpu.core_type<tc>} {
    %c0 = arith.constant 0 : index
    %c0_0 = arith.constant 0 : index
    %0 = vector.load %arg0[%c0, %c0_0] : memref<8x32xf32, #tpu.memory_space<vmem>>, vector<8x32xf32>
    %c0_1 = arith.constant 0 : index
    %c0_2 = arith.constant 0 : index
    %c0_3 = arith.constant 0 : index
    %1 = vector.load %arg1[%c0_1, %c0_2, %c0_3] : memref<2x8x32xf32, #tpu.memory_space<vmem>>, vector<1x8x32xf32>
    %2 = vector.shape_cast %1 : vector<1x8x32xf32> to vector<8x32xf32>
    %c0_4 = arith.constant 0 : index
    %c0_5 = arith.constant 0 : index
    %3 = vector.load %arg3[%c0_4, %c0_5] : memref<32x16xf32, #tpu.memory_space<vmem>>, vector<32x16xf32>
    %cst = arith.constant dense<0.000000e+00> : vector<8x16xf32>
    %4 = tpu.matmul %0, %3, %cst {dimension_numbers = #tpu.dot_dimension_numbers<[1], [0], [0], [1], [0, 0, 1, 1], [], []>} : vector<8x32xf32>, vector<32x16xf32>, vector<8x16xf32> -> vector<8x16xf32>
    %c0_6 = arith.constant 0 : index
    %c0_7 = arith.constant 0 : index
    %5 = vector.load %arg4[%c0_6, %c0_7] : memref<32x16xf32, #tpu.memory_space<vmem>>, vector<32x16xf32>
    %cst_8 = arith.constant dense<0.000000e+00> : vector<8x16xf32>
    %6 = tpu.matmul %2, %5, %cst_8 {dimension_numbers = #tpu.dot_dimension_numbers<[1], [0], [0], [1], [0, 0, 1, 1], [], []>} : vector<8x32xf32>, vector<32x16xf32>, vector<8x16xf32> -> vector<8x16xf32>
    %7 = arith.addf %4, %6 : vector<8x16xf32>
    %c0_9 = arith.constant 0 : index
    %c0_10 = arith.constant 0 : index
    %8 = vector.load %arg9[%c0_9, %c0_10] : memref<11x64xf32, #tpu.memory_space<vmem>>, vector<1x16xf32>
    %9 = vector.broadcast %8 : vector<1x16xf32> to vector<8x16xf32>
    %10 = arith.addf %7, %9 : vector<8x16xf32>
    %cst_11 = arith.constant dense<0xFF800000> : vector<8xf32>
    %11 = vector.multi_reduction <maximumf>, %10, %cst_11 [1] : vector<8x16xf32> to vector<8xf32>
    %12 = vector.shape_cast %11 : vector<8xf32> to vector<8x1xf32>
    %13 = vector.broadcast %12 : vector<8x1xf32> to vector<8x16xf32>
    %14 = arith.subf %10, %13 : vector<8x16xf32>
    %15 = math.exp %14 : vector<8x16xf32>
    %cst_12 = arith.constant dense<0.000000e+00> : vector<8xf32>
    %16 = vector.multi_reduction <add>, %15, %cst_12 [1] : vector<8x16xf32> to vector<8xf32>
    %17 = vector.shape_cast %16 : vector<8xf32> to vector<8x1xf32>
    %18 = tpu.reciprocal %17 : vector<8x1xf32> -> vector<8x1xf32>
    %19 = vector.broadcast %18 : vector<8x1xf32> to vector<8x16xf32>
    %20 = arith.mulf %15, %19 : vector<8x16xf32>
    %c0_13 = arith.constant 0 : index
    %c0_14 = arith.constant 0 : index
    %21 = vector.load %arg13[%c0_13, %c0_14] : memref<8x16xf32, #tpu.memory_space<vmem>>, vector<8x16xf32>
    tpu.vector_store %arg13[%c0_13, %c0_14], %20 {strides = array<i32>} : memref<8x16xf32, #tpu.memory_space<vmem>>, vector<8x16xf32>,
    %c0_15 = arith.constant 0 : index
    %c0_16 = arith.constant 0 : index
    %c0_17 = arith.constant 0 : index
    %22 = vector.load %arg2[%c0_15, %c0_16, %c0_17] : memref<8x16x32xf32, #tpu.memory_space<vmem>>, vector<8x16x32xf32>
    %23 = vector.shape_cast %20 : vector<8x16xf32> to vector<8x1x16xf32>
    "tpu.trace_start"() <{level = 10 : i32, message = "bks,bsh->bkh"}> : () -> ()
    %cst_18 = arith.constant dense<0.000000e+00> : vector<8x1x32xf32>
    %24 = tpu.matmul %23, %22, %cst_18 {dimension_numbers = #tpu.dot_dimension_numbers<[2], [1], [1], [2], [0, 0, 0, 1, 1, 2], [0], [0]>} : vector<8x1x16xf32>, vector<8x16x32xf32>, vector<8x1x32xf32> -> vector<8x1x32xf32>
    "tpu.trace_stop"() : () -> ()
    %25 = vector.shape_cast %24 : vector<8x1x32xf32> to vector<8x32xf32>
    %c0_19 = arith.constant 0 : index
    %c0_20 = arith.constant 0 : index
    %26 = vector.load %arg5[%c0_19, %c0_20] : memref<32x32xf32, #tpu.memory_space<vmem>>, vector<32x32xf32>
    %cst_21 = arith.constant dense<0.000000e+00> : vector<8x32xf32>
    %27 = tpu.matmul %0, %26, %cst_21 {dimension_numbers = #tpu.dot_dimension_numbers<[1], [0], [0], [1], [0, 0, 1, 1], [], []>} : vector<8x32xf32>, vector<32x32xf32>, vector<8x32xf32> -> vector<8x32xf32>
    %c0_22 = arith.constant 0 : index
    %c0_23 = arith.constant 0 : index
    %28 = vector.load %arg6[%c0_22, %c0_23] : memref<32x32xf32, #tpu.memory_space<vmem>>, vector<32x32xf32>
    %cst_24 = arith.constant dense<0.000000e+00> : vector<8x32xf32>
    %29 = tpu.matmul %25, %28, %cst_24 {dimension_numbers = #tpu.dot_dimension_numbers<[1], [0], [0], [1], [0, 0, 1, 1], [], []>} : vector<8x32xf32>, vector<32x32xf32>, vector<8x32xf32> -> vector<8x32xf32>
    %30 = arith.addf %27, %29 : vector<8x32xf32>
    %c1 = arith.constant 1 : index
    %c0_25 = arith.constant 0 : index
    %31 = vector.load %arg9[%c1, %c0_25] : memref<11x64xf32, #tpu.memory_space<vmem>>, vector<1x32xf32>
    %32 = vector.broadcast %31 : vector<1x32xf32> to vector<8x32xf32>
    %33 = arith.addf %30, %32 : vector<8x32xf32>
    %cst_26 = arith.constant 0.000000e+00 : f32
    %34 = vector.broadcast %cst_26 : f32 to vector<8x32xf32>
    %35 = arith.maximumf %33, %34 : vector<8x32xf32>
    %c0_27 = arith.constant 0 : index
    %c0_28 = arith.constant 0 : index
    %c0_29 = arith.constant 0 : index
    %36 = vector.load %arg1[%c0_27, %c0_28, %c0_29] : memref<2x8x32xf32, #tpu.memory_space<vmem>>, vector<1x8x32xf32>
    %37 = vector.shape_cast %36 : vector<1x8x32xf32> to vector<8x32xf32>
    %c2 = arith.constant 2 : index
    %c0_30 = arith.constant 0 : index
    %38 = vector.load %arg9[%c2, %c0_30] : memref<11x64xf32, #tpu.memory_space<vmem>>, vector<1x32xf32>
    %c3 = arith.constant 3 : index
    %c0_31 = arith.constant 0 : index
    %39 = vector.load %arg9[%c3, %c0_31] : memref<11x64xf32, #tpu.memory_space<vmem>>, vector<1x32xf32>
    %c4 = arith.constant 4 : index
    %c0_32 = arith.constant 0 : index
    %40 = vector.load %arg9[%c4, %c0_32] : memref<11x64xf32, #tpu.memory_space<vmem>>, vector<1x32xf32>
    %c5 = arith.constant 5 : index
    %c0_33 = arith.constant 0 : index
    %41 = vector.load %arg9[%c5, %c0_33] : memref<11x64xf32, #tpu.memory_space<vmem>>, vector<1x32xf32>
    %c0_34 = arith.constant 0 : index
    %c0_35 = arith.constant 0 : index
    %c0_36 = arith.constant 0 : index
    %c0_37 = arith.constant 0 : index
    %42 = vector.load %arg7[%c0_34, %c0_35, %c0_36, %c0_37] : memref<2x3x32x32xf32, #tpu.memory_space<vmem>>, vector<1x1x32x32xf32>
    %43 = vector.shape_cast %42 : vector<1x1x32x32xf32> to vector<32x32xf32>
    %cst_38 = arith.constant dense<0.000000e+00> : vector<8x32xf32>
    %44 = tpu.matmul %35, %43, %cst_38 {dimension_numbers = #tpu.dot_dimension_numbers<[1], [0], [0], [1], [0, 0, 1, 1], [], []>} : vector<8x32xf32>, vector<32x32xf32>, vector<8x32xf32> -> vector<8x32xf32>
    %c0_39 = arith.constant 0 : index
    %c0_40 = arith.constant 0 : index
    %c0_41 = arith.constant 0 : index
    %c0_42 = arith.constant 0 : index
    %45 = vector.load %arg8[%c0_39, %c0_40, %c0_41, %c0_42] : memref<2x3x32x32xf32, #tpu.memory_space<vmem>>, vector<1x1x32x32xf32>
    %46 = vector.shape_cast %45 : vector<1x1x32x32xf32> to vector<32x32xf32>
    %cst_43 = arith.constant dense<0.000000e+00> : vector<8x32xf32>
    %47 = tpu.matmul %37, %46, %cst_43 {dimension_numbers = #tpu.dot_dimension_numbers<[1], [0], [0], [1], [0, 0, 1, 1], [], []>} : vector<8x32xf32>, vector<32x32xf32>, vector<8x32xf32> -> vector<8x32xf32>
    %48 = arith.addf %44, %47 : vector<8x32xf32>
    %49 = vector.broadcast %38 : vector<1x32xf32> to vector<8x32xf32>
    %50 = arith.addf %48, %49 : vector<8x32xf32>
    %51 = arith.negf %50 : vector<8x32xf32>
    %52 = math.exp %51 : vector<8x32xf32>
    %cst_44 = arith.constant 1.000000e+00 : f32
    %53 = vector.broadcast %cst_44 : f32 to vector<8x32xf32>
    %54 = arith.addf %53, %52 : vector<8x32xf32>
    %55 = arith.divf %53, %54 : vector<8x32xf32>
    %c0_45 = arith.constant 0 : index
    %c1_46 = arith.constant 1 : index
    %c0_47 = arith.constant 0 : index
    %c0_48 = arith.constant 0 : index
    %56 = vector.load %arg7[%c0_45, %c1_46, %c0_47, %c0_48] : memref<2x3x32x32xf32, #tpu.memory_space<vmem>>, vector<1x1x32x32xf32>
    %57 = vector.shape_cast %56 : vector<1x1x32x32xf32> to vector<32x32xf32>
    %cst_49 = arith.constant dense<0.000000e+00> : vector<8x32xf32>
    %58 = tpu.matmul %35, %57, %cst_49 {dimension_numbers = #tpu.dot_dimension_numbers<[1], [0], [0], [1], [0, 0, 1, 1], [], []>} : vector<8x32xf32>, vector<32x32xf32>, vector<8x32xf32> -> vector<8x32xf32>
    %c0_50 = arith.constant 0 : index
    %c1_51 = arith.constant 1 : index
    %c0_52 = arith.constant 0 : index
    %c0_53 = arith.constant 0 : index
    %59 = vector.load %arg8[%c0_50, %c1_51, %c0_52, %c0_53] : memref<2x3x32x32xf32, #tpu.memory_space<vmem>>, vector<1x1x32x32xf32>
    %60 = vector.shape_cast %59 : vector<1x1x32x32xf32> to vector<32x32xf32>
    %cst_54 = arith.constant dense<0.000000e+00> : vector<8x32xf32>
    %61 = tpu.matmul %37, %60, %cst_54 {dimension_numbers = #tpu.dot_dimension_numbers<[1], [0], [0], [1], [0, 0, 1, 1], [], []>} : vector<8x32xf32>, vector<32x32xf32>, vector<8x32xf32> -> vector<8x32xf32>
    %62 = arith.addf %58, %61 : vector<8x32xf32>
    %63 = vector.broadcast %39 : vector<1x32xf32> to vector<8x32xf32>
    %64 = arith.addf %62, %63 : vector<8x32xf32>
    %65 = arith.negf %64 : vector<8x32xf32>
    %66 = math.exp %65 : vector<8x32xf32>
    %cst_55 = arith.constant 1.000000e+00 : f32
    %67 = vector.broadcast %cst_55 : f32 to vector<8x32xf32>
    %68 = arith.addf %67, %66 : vector<8x32xf32>
    %69 = arith.divf %67, %68 : vector<8x32xf32>
    %c0_56 = arith.constant 0 : index
    %c2_57 = arith.constant 2 : index
    %c0_58 = arith.constant 0 : index
    %c0_59 = arith.constant 0 : index
    %70 = vector.load %arg7[%c0_56, %c2_57, %c0_58, %c0_59] : memref<2x3x32x32xf32, #tpu.memory_space<vmem>>, vector<1x1x32x32xf32>
    %71 = vector.shape_cast %70 : vector<1x1x32x32xf32> to vector<32x32xf32>
    %cst_60 = arith.constant dense<0.000000e+00> : vector<8x32xf32>
    %72 = tpu.matmul %35, %71, %cst_60 {dimension_numbers = #tpu.dot_dimension_numbers<[1], [0], [0], [1], [0, 0, 1, 1], [], []>} : vector<8x32xf32>, vector<32x32xf32>, vector<8x32xf32> -> vector<8x32xf32>
    %73 = vector.broadcast %40 : vector<1x32xf32> to vector<8x32xf32>
    %74 = arith.addf %72, %73 : vector<8x32xf32>
    %c0_61 = arith.constant 0 : index
    %c2_62 = arith.constant 2 : index
    %c0_63 = arith.constant 0 : index
    %c0_64 = arith.constant 0 : index
    %75 = vector.load %arg8[%c0_61, %c2_62, %c0_63, %c0_64] : memref<2x3x32x32xf32, #tpu.memory_space<vmem>>, vector<1x1x32x32xf32>
    %76 = vector.shape_cast %75 : vector<1x1x32x32xf32> to vector<32x32xf32>
    %cst_65 = arith.constant dense<0.000000e+00> : vector<8x32xf32>
    %77 = tpu.matmul %37, %76, %cst_65 {dimension_numbers = #tpu.dot_dimension_numbers<[1], [0], [0], [1], [0, 0, 1, 1], [], []>} : vector<8x32xf32>, vector<32x32xf32>, vector<8x32xf32> -> vector<8x32xf32>
    %78 = vector.broadcast %41 : vector<1x32xf32> to vector<8x32xf32>
    %79 = arith.addf %77, %78 : vector<8x32xf32>
    %80 = arith.mulf %55, %79 : vector<8x32xf32>
    %81 = arith.addf %74, %80 : vector<8x32xf32>
    %82 = math.tanh %81 : vector<8x32xf32>
    %cst_66 = arith.constant 1.000000e+00 : f32
    %83 = vector.broadcast %cst_66 : f32 to vector<8x32xf32>
    %84 = arith.subf %83, %69 : vector<8x32xf32>
    %85 = arith.mulf %84, %82 : vector<8x32xf32>
    %86 = arith.mulf %69, %37 : vector<8x32xf32>
    %87 = arith.addf %85, %86 : vector<8x32xf32>
    %c0_67 = arith.constant 0 : index
    %c0_68 = arith.constant 0 : index
    %c0_69 = arith.constant 0 : index
    %88 = vector.load %arg12[%c0_67, %c0_68, %c0_69] : memref<2x8x32xf32, #tpu.memory_space<vmem>>, vector<1x8x32xf32>
    %89 = vector.shape_cast %88 : vector<1x8x32xf32> to vector<8x32xf32>
    %90 = vector.shape_cast %87 : vector<8x32xf32> to vector<1x8x32xf32>
    tpu.vector_store %arg12[%c0_67, %c0_68, %c0_69], %90 {strides = array<i32>} : memref<2x8x32xf32, #tpu.memory_space<vmem>>, vector<1x8x32xf32>,
    %c1_70 = arith.constant 1 : index
    %c0_71 = arith.constant 0 : index
    %c0_72 = arith.constant 0 : index
    %91 = vector.load %arg1[%c1_70, %c0_71, %c0_72] : memref<2x8x32xf32, #tpu.memory_space<vmem>>, vector<1x8x32xf32>
    %92 = vector.shape_cast %91 : vector<1x8x32xf32> to vector<8x32xf32>
    %c6 = arith.constant 6 : index
    %c0_73 = arith.constant 0 : index
    %93 = vector.load %arg9[%c6, %c0_73] : memref<11x64xf32, #tpu.memory_space<vmem>>, vector<1x32xf32>
    %c7 = arith.constant 7 : index
    %c0_74 = arith.constant 0 : index
    %94 = vector.load %arg9[%c7, %c0_74] : memref<11x64xf32, #tpu.memory_space<vmem>>, vector<1x32xf32>
    %c8 = arith.constant 8 : index
    %c0_75 = arith.constant 0 : index
    %95 = vector.load %arg9[%c8, %c0_75] : memref<11x64xf32, #tpu.memory_space<vmem>>, vector<1x32xf32>
    %c9 = arith.constant 9 : index
    %c0_76 = arith.constant 0 : index
    %96 = vector.load %arg9[%c9, %c0_76] : memref<11x64xf32, #tpu.memory_space<vmem>>, vector<1x32xf32>
    %c1_77 = arith.constant 1 : index
    %c0_78 = arith.constant 0 : index
    %c0_79 = arith.constant 0 : index
    %c0_80 = arith.constant 0 : index
    %97 = vector.load %arg7[%c1_77, %c0_78, %c0_79, %c0_80] : memref<2x3x32x32xf32, #tpu.memory_space<vmem>>, vector<1x1x32x32xf32>
    %98 = vector.shape_cast %97 : vector<1x1x32x32xf32> to vector<32x32xf32>
    %cst_81 = arith.constant dense<0.000000e+00> : vector<8x32xf32>
    %99 = tpu.matmul %87, %98, %cst_81 {dimension_numbers = #tpu.dot_dimension_numbers<[1], [0], [0], [1], [0, 0, 1, 1], [], []>} : vector<8x32xf32>, vector<32x32xf32>, vector<8x32xf32> -> vector<8x32xf32>
    %c1_82 = arith.constant 1 : index
    %c0_83 = arith.constant 0 : index
    %c0_84 = arith.constant 0 : index
    %c0_85 = arith.constant 0 : index
    %100 = vector.load %arg8[%c1_82, %c0_83, %c0_84, %c0_85] : memref<2x3x32x32xf32, #tpu.memory_space<vmem>>, vector<1x1x32x32xf32>
    %101 = vector.shape_cast %100 : vector<1x1x32x32xf32> to vector<32x32xf32>
    %cst_86 = arith.constant dense<0.000000e+00> : vector<8x32xf32>
    %102 = tpu.matmul %92, %101, %cst_86 {dimension_numbers = #tpu.dot_dimension_numbers<[1], [0], [0], [1], [0, 0, 1, 1], [], []>} : vector<8x32xf32>, vector<32x32xf32>, vector<8x32xf32> -> vector<8x32xf32>
    %103 = arith.addf %99, %102 : vector<8x32xf32>
    %104 = vector.broadcast %93 : vector<1x32xf32> to vector<8x32xf32>
    %105 = arith.addf %103, %104 : vector<8x32xf32>
    %106 = arith.negf %105 : vector<8x32xf32>
    %107 = math.exp %106 : vector<8x32xf32>
    %cst_87 = arith.constant 1.000000e+00 : f32
    %108 = vector.broadcast %cst_87 : f32 to vector<8x32xf32>
    %109 = arith.addf %108, %107 : vector<8x32xf32>
    %110 = arith.divf %108, %109 : vector<8x32xf32>
    %c1_88 = arith.constant 1 : index
    %c1_89 = arith.constant 1 : index
    %c0_90 = arith.constant 0 : index
    %c0_91 = arith.constant 0 : index
    %111 = vector.load %arg7[%c1_88, %c1_89, %c0_90, %c0_91] : memref<2x3x32x32xf32, #tpu.memory_space<vmem>>, vector<1x1x32x32xf32>
    %112 = vector.shape_cast %111 : vector<1x1x32x32xf32> to vector<32x32xf32>
    %cst_92 = arith.constant dense<0.000000e+00> : vector<8x32xf32>
    %113 = tpu.matmul %87, %112, %cst_92 {dimension_numbers = #tpu.dot_dimension_numbers<[1], [0], [0], [1], [0, 0, 1, 1], [], []>} : vector<8x32xf32>, vector<32x32xf32>, vector<8x32xf32> -> vector<8x32xf32>
    %c1_93 = arith.constant 1 : index
    %c1_94 = arith.constant 1 : index
    %c0_95 = arith.constant 0 : index
    %c0_96 = arith.constant 0 : index
    %114 = vector.load %arg8[%c1_93, %c1_94, %c0_95, %c0_96] : memref<2x3x32x32xf32, #tpu.memory_space<vmem>>, vector<1x1x32x32xf32>
    %115 = vector.shape_cast %114 : vector<1x1x32x32xf32> to vector<32x32xf32>
    %cst_97 = arith.constant dense<0.000000e+00> : vector<8x32xf32>
    %116 = tpu.matmul %92, %115, %cst_97 {dimension_numbers = #tpu.dot_dimension_numbers<[1], [0], [0], [1], [0, 0, 1, 1], [], []>} : vector<8x32xf32>, vector<32x32xf32>, vector<8x32xf32> -> vector<8x32xf32>
    %117 = arith.addf %113, %116 : vector<8x32xf32>
    %118 = vector.broadcast %94 : vector<1x32xf32> to vector<8x32xf32>
    %119 = arith.addf %117, %118 : vector<8x32xf32>
    %120 = arith.negf %119 : vector<8x32xf32>
    %121 = math.exp %120 : vector<8x32xf32>
    %cst_98 = arith.constant 1.000000e+00 : f32
    %122 = vector.broadcast %cst_98 : f32 to vector<8x32xf32>
    %123 = arith.addf %122, %121 : vector<8x32xf32>
    %124 = arith.divf %122, %123 : vector<8x32xf32>
    %c1_99 = arith.constant 1 : index
    %c2_100 = arith.constant 2 : index
    %c0_101 = arith.constant 0 : index
    %c0_102 = arith.constant 0 : index
    %125 = vector.load %arg7[%c1_99, %c2_100, %c0_101, %c0_102] : memref<2x3x32x32xf32, #tpu.memory_space<vmem>>, vector<1x1x32x32xf32>
    %126 = vector.shape_cast %125 : vector<1x1x32x32xf32> to vector<32x32xf32>
    %cst_103 = arith.constant dense<0.000000e+00> : vector<8x32xf32>
    %127 = tpu.matmul %87, %126, %cst_103 {dimension_numbers = #tpu.dot_dimension_numbers<[1], [0], [0], [1], [0, 0, 1, 1], [], []>} : vector<8x32xf32>, vector<32x32xf32>, vector<8x32xf32> -> vector<8x32xf32>
    %128 = vector.broadcast %95 : vector<1x32xf32> to vector<8x32xf32>
    %129 = arith.addf %127, %128 : vector<8x32xf32>
    %c1_104 = arith.constant 1 : index
    %c2_105 = arith.constant 2 : index
    %c0_106 = arith.constant 0 : index
    %c0_107 = arith.constant 0 : index
    %130 = vector.load %arg8[%c1_104, %c2_105, %c0_106, %c0_107] : memref<2x3x32x32xf32, #tpu.memory_space<vmem>>, vector<1x1x32x32xf32>
    %131 = vector.shape_cast %130 : vector<1x1x32x32xf32> to vector<32x32xf32>
    %cst_108 = arith.constant dense<0.000000e+00> : vector<8x32xf32>
    %132 = tpu.matmul %92, %131, %cst_108 {dimension_numbers = #tpu.dot_dimension_numbers<[1], [0], [0], [1], [0, 0, 1, 1], [], []>} : vector<8x32xf32>, vector<32x32xf32>, vector<8x32xf32> -> vector<8x32xf32>
    %133 = vector.broadcast %96 : vector<1x32xf32> to vector<8x32xf32>
    %134 = arith.addf %132, %133 : vector<8x32xf32>
    %135 = arith.mulf %110, %134 : vector<8x32xf32>
    %136 = arith.addf %129, %135 : vector<8x32xf32>
    %137 = math.tanh %136 : vector<8x32xf32>
    %cst_109 = arith.constant 1.000000e+00 : f32
    %138 = vector.broadcast %cst_109 : f32 to vector<8x32xf32>
    %139 = arith.subf %138, %124 : vector<8x32xf32>
    %140 = arith.mulf %139, %137 : vector<8x32xf32>
    %141 = arith.mulf %124, %92 : vector<8x32xf32>
    %142 = arith.addf %140, %141 : vector<8x32xf32>
    %c1_110 = arith.constant 1 : index
    %c0_111 = arith.constant 0 : index
    %c0_112 = arith.constant 0 : index
    %143 = vector.load %arg12[%c1_110, %c0_111, %c0_112] : memref<2x8x32xf32, #tpu.memory_space<vmem>>, vector<1x8x32xf32>
    %144 = vector.shape_cast %143 : vector<1x8x32xf32> to vector<8x32xf32>
    %145 = vector.shape_cast %142 : vector<8x32xf32> to vector<1x8x32xf32>
    tpu.vector_store %arg12[%c1_110, %c0_111, %c0_112], %145 {strides = array<i32>} : memref<2x8x32xf32, #tpu.memory_space<vmem>>, vector<1x8x32xf32>,
    %c0_113 = arith.constant 0 : index
    %c0_114 = arith.constant 0 : index
    %146 = vector.load %arg10[%c0_113, %c0_114] : memref<32x64xf32, #tpu.memory_space<vmem>>, vector<32x64xf32>
    %cst_115 = arith.constant dense<0.000000e+00> : vector<8x64xf32>
    %147 = tpu.matmul %142, %146, %cst_115 {dimension_numbers = #tpu.dot_dimension_numbers<[1], [0], [0], [1], [0, 0, 1, 1], [], []>} : vector<8x32xf32>, vector<32x64xf32>, vector<8x64xf32> -> vector<8x64xf32>
    %c10 = arith.constant 10 : index
    %c0_116 = arith.constant 0 : index
    %148 = vector.load %arg9[%c10, %c0_116] : memref<11x64xf32, #tpu.memory_space<vmem>>, vector<1x64xf32>
    %149 = vector.broadcast %148 : vector<1x64xf32> to vector<8x64xf32>
    %150 = arith.addf %147, %149 : vector<8x64xf32>
    %cst_117 = arith.constant dense<0xFF800000> : vector<8xf32>
    %151 = vector.multi_reduction <maximumf>, %150, %cst_117 [1] : vector<8x64xf32> to vector<8xf32>
    %152 = vector.shape_cast %151 : vector<8xf32> to vector<8x1xf32>
    %153 = vector.broadcast %152 : vector<8x1xf32> to vector<8x64xf32>
    %154 = arith.subf %150, %153 : vector<8x64xf32>
    %155 = math.exp %154 : vector<8x64xf32>
    %cst_118 = arith.constant dense<0.000000e+00> : vector<8xf32>
    %156 = vector.multi_reduction <add>, %155, %cst_118 [1] : vector<8x64xf32> to vector<8xf32>
    %157 = vector.shape_cast %156 : vector<8xf32> to vector<8x1xf32>
    %158 = math.log %157 : vector<8x1xf32>
    %159 = vector.broadcast %158 : vector<8x1xf32> to vector<8x64xf32>
    %160 = arith.subf %154, %159 : vector<8x64xf32>
    %c0_119 = arith.constant 0 : index
    %c0_120 = arith.constant 0 : index
    %161 = vector.load %arg11[%c0_119, %c0_120] : memref<8x64xf32, #tpu.memory_space<vmem>>, vector<8x64xf32>
    tpu.vector_store %arg11[%c0_119, %c0_120], %160 {strides = array<i32>} : memref<8x64xf32, #tpu.memory_space<vmem>>, vector<8x64xf32>,
    return
  }
}

</mosaic_0001>

<llo_original>
// kernel: tpu_custom_call.1
$region0: #{tpu_custom_call.1}
  #allocation0 [shape = 'u32[]', space=smem, size = 0x4, offset = 0x4, fixed_abs, tag = 'smem constant byte address 0x4 - core index']
  #allocation1 [shape = 'u32[72,128]{1,0:T(1,128)}', space=vmem, size = 0x9000, scoped, tag = 'internal scratch']
  %s0 = inlined_call_operand.hbm [shape: f32[8,32], index: 0, kind: input, shape index: {}]
  %s1 = inlined_call_operand.hbm [shape: f32[2,8,32], index: 1, kind: input, shape index: {}]
  %s2 = inlined_call_operand.hbm [shape: f32[8,16,32], index: 2, kind: input, shape index: {}]
  %s3 = inlined_call_operand.vmem [shape: f32[32,16], index: 3, kind: input, shape index: {}]
  %s4 = inlined_call_operand.vmem [shape: f32[32,16], index: 4, kind: input, shape index: {}]
  %s5 = inlined_call_operand.vmem [shape: f32[32,32], index: 5, kind: input, shape index: {}]
  %s6 = inlined_call_operand.vmem [shape: f32[32,32], index: 6, kind: input, shape index: {}]
  %s7 = inlined_call_operand.hbm [shape: f32[2,3,32,32], index: 7, kind: input, shape index: {}]
  %s8 = inlined_call_operand.hbm [shape: f32[2,3,32,32], index: 8, kind: input, shape index: {}]
  %s9 = inlined_call_operand.hbm [shape: f32[11,64], index: 9, kind: input, shape index: {}]
  %s10 = inlined_call_operand.vmem [shape: f32[32,64], index: 10, kind: input, shape index: {}]
  %s11 = inlined_call_operand.hbm [shape: f32[8,64], index: 11, kind: output, shape index: {0}]
  %s12 = inlined_call_operand.hbm [shape: f32[2,8,32], index: 12, kind: output, shape index: {1}]
  %s13 = inlined_call_operand.hbm [shape: f32[8,16], index: 13, kind: output, shape index: {2}]
  %14 = xla_tuple %s11, %s12, %s13
  %s15 = sld [smem:[#allocation0]]
  $region94: #{tpu_custom_call.1} parent=0
    _
  %s17 = ssub.s32 1, %s15
  %s18 = scalar_select 0, %s17, %s15
  $region1: #{tpu_custom_call.1} parent=0
    #allocation2 [shape = 'u8[4096]{0}', space=vmem, size = 0x1000, scoped, tag = 'input window, operand 0, single buffered']
    #allocation3 [shape = 's32[1]{0}', space=sflag, size = 0x4, scoped, tag = 'scoped memory for tpu_custom_call.1']
    #allocation4 [shape = 's32[1]{0}', space=sflag, size = 0x4, scoped, tag = 'scoped memory for tpu_custom_call.1']
    #allocation5 [shape = 'u8[8192]{0}', space=vmem, size = 0x2000, scoped, tag = 'input window, operand 1, single buffered']
    #allocation6 [shape = 's32[1]{0}', space=sflag, size = 0x4, scoped, tag = 'scoped memory for tpu_custom_call.1']
    #allocation7 [shape = 'u8[65536]{0}', space=vmem, size = 0x10000, scoped, tag = 'input window, operand 2, single buffered']
    #allocation8 [shape = 'u8[98304]{0}', space=vmem, size = 0x18000, scoped, tag = 'input window, operand 7, single buffered']
    #allocation9 [shape = 's32[1]{0}', space=sflag, size = 0x4, scoped, tag = 'scoped memory for tpu_custom_call.1']
    #allocation10 [shape = 'u8[98304]{0}', space=vmem, size = 0x18000, scoped, tag = 'input window, operand 8, single buffered']
    #allocation11 [shape = 'u8[8192]{0}', space=vmem, size = 0x2000, scoped, tag = 'input window, operand 9, single buffered']
    #allocation12 [shape = 's32[1]{0}', space=sflag, size = 0x4, scoped, tag = 'scoped memory for tpu_custom_call.1']
    #allocation13 [shape = 'u8[4096]{0}', space=vmem, size = 0x1000, scoped, tag = 'output window, operand 0, single buffered']
    #allocation14 [shape = 'u8[8192]{0}', space=vmem, size = 0x2000, scoped, tag = 'output window, operand 1, single buffered']
    #allocation15 [shape = 's32[1]{0}', space=sflag, size = 0x4, scoped, tag = 'scoped memory for tpu_custom_call.1']
    #allocation16 [shape = 'u8[4096]{0}', space=vmem, size = 0x1000, scoped, tag = 'output window, operand 2, single buffered']
    %19 = vsyncpa [#allocation3], 0
    %20 = vsyncpa [#allocation6], 0
    %21 = vsyncpa [#allocation9], 0
    %22 = vsyncpa [#allocation12], 0
    %23 = vsyncpa [#allocation4], 0
    %24 = vsyncpa [#allocation15], 0
    // Predicated region
    $region2: #{tpu_custom_call.1} parent=1 // pred_check
      _
    $region3: #{tpu_custom_call.1} parent=1 // pred_check_branch
      %26 = sbr.rel (0) target = $region5
    $region4: #{tpu_custom_call.1} parent=1 // pred_region
      %28 = vsyncadd [#allocation3], 0
      %s30 = sshll.u32 %s0, 4
      %s31 = int_to_ptr.hbm [resolvable:$true] %s30
      %s32 = sshll.u32 [#allocation2], 4
      %s33 = int_to_ptr.vmem [resolvable:$true] %s32
      %35 = dma.hbm_to_vmem [thread:$0]  %s31, 128, %s33, [#allocation3]
    $region5: #{tpu_custom_call.1} parent=1 // pred_fallthru
      _
    // Predicated region
    $region6: #{tpu_custom_call.1} parent=1 // pred_check
      _
    $region7: #{tpu_custom_call.1} parent=1 // pred_check_branch
      %37 = sbr.rel (0) target = $region9
    $region8: #{tpu_custom_call.1} parent=1 // pred_region
      %39 = vsyncadd [#allocation6], 0
      %s40 = sshll.u32 %s1, 4
      %s41 = int_to_ptr.hbm [resolvable:$true] %s40
      %s42 = sshll.u32 [#allocation5], 4
      %s43 = int_to_ptr.vmem [resolvable:$true] %s42
      %48 = dma.hbm_to_vmem [thread:$0]  %s41, 256, %s43, [#allocation6], 128, 128, 8
    $region9: #{tpu_custom_call.1} parent=1 // pred_fallthru
      _
    // Predicated region
    $region10: #{tpu_custom_call.1} parent=1 // pred_check
      _
    $region11: #{tpu_custom_call.1} parent=1 // pred_check_branch
      %50 = sbr.rel (0) target = $region13
    $region12: #{tpu_custom_call.1} parent=1 // pred_region
      %52 = vsyncadd [#allocation6], 0
      %s53 = sshll.u32 %s2, 4
      %s54 = int_to_ptr.hbm [resolvable:$true] %s53
      %s55 = sshll.u32 [#allocation7], 4
      %s56 = int_to_ptr.vmem [resolvable:$true] %s55
      %61 = dma.hbm_to_vmem [thread:$0]  %s54, 2048, %s56, [#allocation6], 128, 128, 8
    $region13: #{tpu_custom_call.1} parent=1 // pred_fallthru
      _
    // Predicated region
    $region14: #{tpu_custom_call.1} parent=1 // pred_check
      _
    $region15: #{tpu_custom_call.1} parent=1 // pred_check_branch
      %63 = sbr.rel (0) target = $region17
    $region16: #{tpu_custom_call.1} parent=1 // pred_region
      _
    $region17: #{tpu_custom_call.1} parent=1 // pred_fallthru
      _
    // Predicated region
    $region18: #{tpu_custom_call.1} parent=1 // pred_check
      _
    $region19: #{tpu_custom_call.1} parent=1 // pred_check_branch
      %65 = sbr.rel (0) target = $region21
    $region20: #{tpu_custom_call.1} parent=1 // pred_region
      _
    $region21: #{tpu_custom_call.1} parent=1 // pred_fallthru
      _
    // Predicated region
    $region22: #{tpu_custom_call.1} parent=1 // pred_check
      _
    $region23: #{tpu_custom_call.1} parent=1 // pred_check_branch
      %67 = sbr.rel (0) target = $region25
    $region24: #{tpu_custom_call.1} parent=1 // pred_region
      _
    $region25: #{tpu_custom_call.1} parent=1 // pred_fallthru
      _
    // Predicated region
    $region26: #{tpu_custom_call.1} parent=1 // pred_check
      _
    $region27: #{tpu_custom_call.1} parent=1 // pred_check_branch
      %69 = sbr.rel (0) target = $region29
    $region28: #{tpu_custom_call.1} parent=1 // pred_region
      _
    $region29: #{tpu_custom_call.1} parent=1 // pred_fallthru
      _
    // Predicated region
    $region30: #{tpu_custom_call.1} parent=1 // pred_check
      _
    $region31: #{tpu_custom_call.1} parent=1 // pred_check_branch
      %71 = sbr.rel (0) target = $region33
    $region32: #{tpu_custom_call.1} parent=1 // pred_region
      %73 = vsyncadd [#allocation9], 0
      %s74 = sshll.u32 %s7, 4
      %s75 = int_to_ptr.hbm [resolvable:$true] %s74
      %s76 = sshll.u32 [#allocation8], 4
      %s77 = int_to_ptr.vmem [resolvable:$true] %s76
      %82 = dma.hbm_to_vmem [thread:$0]  %s75, 3072, %s77, [#allocation9], 128, 128, 8
    $region33: #{tpu_custom_call.1} parent=1 // pred_fallthru
      _
    // Predicated region
    $region34: #{tpu_custom_call.1} parent=1 // pred_check
      _
    $region35: #{tpu_custom_call.1} parent=1 // pred_check_branch
      %84 = sbr.rel (0) target = $region37
    $region36: #{tpu_custom_call.1} parent=1 // pred_region
      %86 = vsyncadd [#allocation9], 0
      %s87 = sshll.u32 %s8, 4
      %s88 = int_to_ptr.hbm [resolvable:$true] %s87
      %s89 = sshll.u32 [#allocation10], 4
      %s90 = int_to_ptr.vmem [resolvable:$true] %s89
      %95 = dma.hbm_to_vmem [thread:$0]  %s88, 3072, %s90, [#allocation9], 128, 128, 8
    $region37: #{tpu_custom_call.1} parent=1 // pred_fallthru
      _
    // Predicated region
    $region38: #{tpu_custom_call.1} parent=1 // pred_check
      _
    $region39: #{tpu_custom_call.1} parent=1 // pred_check_branch
      %97 = sbr.rel (0) target = $region41
    $region40: #{tpu_custom_call.1} parent=1 // pred_region
      %99 = vsyncadd [#allocation12], 0
      %s100 = sshll.u32 %s9, 4
      %s101 = int_to_ptr.hbm [resolvable:$true] %s100
      %s102 = sshll.u32 [#allocation11], 4
      %s103 = int_to_ptr.vmem [resolvable:$true] %s102
      %108 = dma.hbm_to_vmem [thread:$0]  %s101, 256, %s103, [#allocation12], 128, 128, 8
    $region41: #{tpu_custom_call.1} parent=1 // pred_fallthru
      _
    // Predicated region
    $region42: #{tpu_custom_call.1} parent=1 // pred_check
      _
    $region43: #{tpu_custom_call.1} parent=1 // pred_check_branch
      %110 = sbr.rel (0) target = $region45
    $region44: #{tpu_custom_call.1} parent=1 // pred_region
      _
    $region45: #{tpu_custom_call.1} parent=1 // pred_fallthru
      _
    // Predicated region
    $region46: #{tpu_custom_call.1} parent=1 // pred_check
      _
    $region47: #{tpu_custom_call.1} parent=1 // pred_check_branch
      %112 = sbr.rel (0) target = $region49
    $region48: #{tpu_custom_call.1} parent=1 // pred_region
      %114 = dma.done [#allocation3], 128
    $region49: #{tpu_custom_call.1} parent=1 // pred_fallthru
      _
    // Predicated region
    $region50: #{tpu_custom_call.1} parent=1 // pred_check
      _
    $region51: #{tpu_custom_call.1} parent=1 // pred_check_branch
      %116 = sbr.rel (0) target = $region53
    $region52: #{tpu_custom_call.1} parent=1 // pred_region
      %118 = dma.done [#allocation6], 256
    $region53: #{tpu_custom_call.1} parent=1 // pred_fallthru
      _
    // Predicated region
    $region54: #{tpu_custom_call.1} parent=1 // pred_check
      _
    $region55: #{tpu_custom_call.1} parent=1 // pred_check_branch
      %120 = sbr.rel (0) target = $region57
    $region56: #{tpu_custom_call.1} parent=1 // pred_region
      %122 = dma.done [#allocation6], 2048
    $region57: #{tpu_custom_call.1} parent=1 // pred_fallthru
      _
    // Predicated region
    $region58: #{tpu_custom_call.1} parent=1 // pred_check
      _
    $region59: #{tpu_custom_call.1} parent=1 // pred_check_branch
      %124 = sbr.rel (0) target = $region61
    $region60: #{tpu_custom_call.1} parent=1 // pred_region
      %126 = dma.done [#allocation9], 3072
    $region61: #{tpu_custom_call.1} parent=1 // pred_fallthru
      _
    // Predicated region
    $region62: #{tpu_custom_call.1} parent=1 // pred_check
      _
    $region63: #{tpu_custom_call.1} parent=1 // pred_check_branch
      %128 = sbr.rel (0) target = $region65
    $region64: #{tpu_custom_call.1} parent=1 // pred_region
      %130 = dma.done [#allocation9], 3072
    $region65: #{tpu_custom_call.1} parent=1 // pred_fallthru
      _
    // Predicated region
    $region66: #{tpu_custom_call.1} parent=1 // pred_check
      _
    $region67: #{tpu_custom_call.1} parent=1 // pred_check_branch
      %132 = sbr.rel (0) target = $region69
    $region68: #{tpu_custom_call.1} parent=1 // pred_region
      %134 = dma.done [#allocation12], 256
    $region69: #{tpu_custom_call.1} parent=1 // pred_fallthru
      _
    %v135 = vld [vmem:[#allocation2] sm:$0xff]
    %v136 = vld [vmem:[#allocation5] sm:$0xff]
    %v137 = vld [vmem:[%s3] sm:$0xff]
    %v138 = vld [vmem:[%s3 + $0x8] sm:$0xff]
    %v139 = vld [vmem:[%s3 + $0x10] sm:$0xff]
    %v140 = vld [vmem:[%s3 + $0x18] sm:$0xff]
    %v141 = vld [vmem:[%s4] sm:$0xff]
    %v142 = vld [vmem:[%s4 + $0x8] sm:$0xff]
    %v143 = vld [vmem:[%s4 + $0x10] sm:$0xff]
    %v144 = vld [vmem:[%s4 + $0x18] sm:$0xff]
    %vm145 = vcmask 261120
    %v147 = vsel %vm145, %v136, 0
    %149 = vmatpush.msra.mxu0 0.0
    %150 = vmatpush.msra.mxu0 0.0
    %151 = vmatpush.msra.mxu0 0.0
    %152 = vmatpush.msra.mxu0 0.0
    %153 = vmatpush.msra.mxu0 0.0
    %154 = vmatpush.msra.mxu0 0.0
    %155 = vmatpush.msra.mxu0 0.0
    %156 = vmatpush.msra.mxu0 0.0
    %157 = vmatpush.msra.mxu0 0.0
    %158 = vmatpush.msra.mxu0 0.0
    %159 = vmatpush.msra.mxu0 0.0
    %160 = vmatpush.msra.mxu0 0.0
    %161 = vmatpush.msra.mxu0 %v144
    %162 = vmatpush.msra.mxu0 %v143
    %163 = vmatpush.msra.mxu0 %v142
    %164 = vmatpush.msra.mxu0 %v141
    %165 = vmatmul.f32.gmra.mxu0 %v147
    %v166 = vpop.f32.mrf.mxu0
    %v167 = vadd.f32 0.0, %v166
    %168 = vdwg.mxu0
    %v170 = vsel %vm145, %v135, 0
    %172 = vmatpush.msra.mxu0 0.0
    %173 = vmatpush.msra.mxu0 0.0
    %174 = vmatpush.msra.mxu0 0.0
    %175 = vmatpush.msra.mxu0 0.0
    %176 = vmatpush.msra.mxu0 0.0
    %177 = vmatpush.msra.mxu0 0.0
    %178 = vmatpush.msra.mxu0 0.0
    %179 = vmatpush.msra.mxu0 0.0
    %180 = vmatpush.msra.mxu0 0.0
    %181 = vmatpush.msra.mxu0 0.0
    %182 = vmatpush.msra.mxu0 0.0
    %183 = vmatpush.msra.mxu0 0.0
    %184 = vmatpush.msra.mxu0 %v140
    %185 = vmatpush.msra.mxu0 %v139
    %186 = vmatpush.msra.mxu0 %v138
    %187 = vmatpush.msra.mxu0 %v137
    %188 = vmatmul.f32.gmra.mxu0 %v170
    %v189 = vpop.f32.mrf.mxu0
    %v190 = vadd.f32 %v167, %v189
    %191 = vdwg.mxu0
    %v192 = vld [vmem:[#allocation11] sm:$0x1]
    %v193 = vperm.slane %v192, 0
    %v194 = vadd.f32 %v190, %v193
    %vm195 = vcmask 130048
    %v196 = vsel %vm195, %v194, -inf
    %197 = vmax.xlane.f32.xlu0 %v196
    %v198 = vpop.xlane.xlu0 %197
    %v199 = vsub.f32 %v194, %v198
    %v200 = vmul.f32 %v199, 1.442695
    %v201 = vpow.pop %v200
    %v202 = vsel %vm195, %v201, 0.0
    %203 = vadd.xlane.f32.xlu0 %v202
    %v204 = vpop.xlane.xlu0 %203
    %v205 = vrcp.pop %v204
    %v206 = vmul.f32 %v204, %v205
    %v207 = vsub.f32 1.0, %v206
    %v208 = vmul.f32 %v205, %v207
    %v209 = vadd.f32 %v205, %v208
    %vm210 = vweird.f32 %v204
    %vm211 = vweird.f32 %v205
    %vm212 = vmor %vm210, %vm211
    %v213 = vsel %vm212, %v205, %v209
    %v214 = vand.u32 2147483647, %v204
    %vm215 = vcmp.eq.f32.partialorder %v214, 8.507059e+37
    %v216 = vand.u32 %v204, 2147483648
    %v217 = vor.u32 1.1754944e-38, %v216
    %v218 = vsel %vm215, %v217, %v213
    %v219 = vmul.f32 %v201, %v218
    %220 = vst.msk [vmem:[#allocation16] sm:$0xff] %vm195, %v219
    %v221 = vld [vmem:[#allocation7] sm:$0xff]
    %v222 = vld [vmem:[#allocation7 + $0x8] sm:$0xff]
    %v223 = vld [vmem:[#allocation7 + $0x10] sm:$0xff]
    %v224 = vld [vmem:[#allocation7 + $0x18] sm:$0xff]
    %v225 = vld [vmem:[#allocation7 + $0x20] sm:$0xff]
    %v226 = vld [vmem:[#allocation7 + $0x28] sm:$0xff]
    %v227 = vld [vmem:[#allocation7 + $0x30] sm:$0xff]
    %v228 = vld [vmem:[#allocation7 + $0x38] sm:$0xff]
    %v229 = vld [vmem:[#allocation7 + $0x40] sm:$0xff]
    %v230 = vld [vmem:[#allocation7 + $0x48] sm:$0xff]
    %v231 = vld [vmem:[#allocation7 + $0x50] sm:$0xff]
    %v232 = vld [vmem:[#allocation7 + $0x58] sm:$0xff]
    %v233 = vld [vmem:[#allocation7 + $0x60] sm:$0xff]
    %v234 = vld [vmem:[#allocation7 + $0x68] sm:$0xff]
    %v235 = vld [vmem:[#allocation7 + $0x70] sm:$0xff]
    %v236 = vld [vmem:[#allocation7 + $0x78] sm:$0xff]
    %v238 = vrot.slane %v219, 1
    %v239 = vrot.slane %v219, 2
    %v240 = vrot.slane %v219, 3
    %v241 = vrot.slane %v219, 4
    %v242 = vrot.slane %v219, 5
    %v243 = vrot.slane %v219, 6
    %v244 = vrot.slane %v219, 7
    %v245 = vsel %vm195, %v219, 0
    %247 = vmatpush.msra.mxu0 0.0
    %248 = vmatpush.msra.mxu0 0.0
    %249 = vmatpush.msra.mxu0 0.0
    %250 = vmatpush.msra.mxu0 0.0
    %251 = vmatpush.msra.mxu0 0.0
    %252 = vmatpush.msra.mxu0 0.0
    %253 = vmatpush.msra.mxu0 0.0
    %254 = vmatpush.msra.mxu0 0.0
    %255 = vmatpush.msra.mxu0 0.0
    %256 = vmatpush.msra.mxu0 0.0
    %257 = vmatpush.msra.mxu0 0.0
    %258 = vmatpush.msra.mxu0 0.0
    %259 = vmatpush.msra.mxu0 0.0
    %260 = vmatpush.msra.mxu0 0.0
    %261 = vmatpush.msra.mxu0 %v222
    %262 = vmatpush.msra.mxu0 %v221
    %263 = vmatmul.f32.gmra.mxu0 %v245
    %v264 = vpop.f32.mrf.mxu0
    %v265 = vadd.f32 0.0, %v264
    %266 = vdwg.mxu0
    %v267 = vsel %vm195, %v238, 0
    %269 = vmatpush.msra.mxu0 0.0
    %270 = vmatpush.msra.mxu0 0.0
    %271 = vmatpush.msra.mxu0 0.0
    %272 = vmatpush.msra.mxu0 0.0
    %273 = vmatpush.msra.mxu0 0.0
    %274 = vmatpush.msra.mxu0 0.0
    %275 = vmatpush.msra.mxu0 0.0
    %276 = vmatpush.msra.mxu0 0.0
    %277 = vmatpush.msra.mxu0 0.0
    %278 = vmatpush.msra.mxu0 0.0
    %279 = vmatpush.msra.mxu0 0.0
    %280 = vmatpush.msra.mxu0 0.0
    %281 = vmatpush.msra.mxu0 0.0
    %282 = vmatpush.msra.mxu0 0.0
    %283 = vmatpush.msra.mxu0 %v224
    %284 = vmatpush.msra.mxu0 %v223
    %285 = vmatmul.f32.gmra.mxu0 %v267
    %v286 = vpop.f32.mrf.mxu0
    %v287 = vadd.f32 0.0, %v286
    %288 = vdwg.mxu0
    %v289 = vsel %vm195, %v239, 0
    %291 = vmatpush.msra.mxu0 0.0
    %292 = vmatpush.msra.mxu0 0.0
    %293 = vmatpush.msra.mxu0 0.0
    %294 = vmatpush.msra.mxu0 0.0
    %295 = vmatpush.msra.mxu0 0.0
    %296 = vmatpush.msra.mxu0 0.0
    %297 = vmatpush.msra.mxu0 0.0
    %298 = vmatpush.msra.mxu0 0.0
    %299 = vmatpush.msra.mxu0 0.0
    %300 = vmatpush.msra.mxu0 0.0
    %301 = vmatpush.msra.mxu0 0.0
    %302 = vmatpush.msra.mxu0 0.0
    %303 = vmatpush.msra.mxu0 0.0
    %304 = vmatpush.msra.mxu0 0.0
    %305 = vmatpush.msra.mxu0 %v226
    %306 = vmatpush.msra.mxu0 %v225
    %307 = vmatmul.f32.gmra.mxu0 %v289
    %v308 = vpop.f32.mrf.mxu0
    %v309 = vadd.f32 0.0, %v308
    %310 = vdwg.mxu0
    %v311 = vsel %vm195, %v240, 0
    %313 = vmatpush.msra.mxu0 0.0
    %314 = vmatpush.msra.mxu0 0.0
    %315 = vmatpush.msra.mxu0 0.0
    %316 = vmatpush.msra.mxu0 0.0
    %317 = vmatpush.msra.mxu0 0.0
    %318 = vmatpush.msra.mxu0 0.0
    %319 = vmatpush.msra.mxu0 0.0
    %320 = vmatpush.msra.mxu0 0.0
    %321 = vmatpush.msra.mxu0 0.0
    %322 = vmatpush.msra.mxu0 0.0
    %323 = vmatpush.msra.mxu0 0.0
    %324 = vmatpush.msra.mxu0 0.0
    %325 = vmatpush.msra.mxu0 0.0
    %326 = vmatpush.msra.mxu0 0.0
    %327 = vmatpush.msra.mxu0 %v228
    %328 = vmatpush.msra.mxu0 %v227
    %329 = vmatmul.f32.gmra.mxu0 %v311
    %v330 = vpop.f32.mrf.mxu0
    %v331 = vadd.f32 0.0, %v330
    %332 = vdwg.mxu0
    %v333 = vsel %vm195, %v241, 0
    %335 = vmatpush.msra.mxu0 0.0
    %336 = vmatpush.msra.mxu0 0.0
    %337 = vmatpush.msra.mxu0 0.0
    %338 = vmatpush.msra.mxu0 0.0
    %339 = vmatpush.msra.mxu0 0.0
    %340 = vmatpush.msra.mxu0 0.0
    %341 = vmatpush.msra.mxu0 0.0
    %342 = vmatpush.msra.mxu0 0.0
    %343 = vmatpush.msra.mxu0 0.0
    %344 = vmatpush.msra.mxu0 0.0
    %345 = vmatpush.msra.mxu0 0.0
    %346 = vmatpush.msra.mxu0 0.0
    %347 = vmatpush.msra.mxu0 0.0
    %348 = vmatpush.msra.mxu0 0.0
    %349 = vmatpush.msra.mxu0 %v230
    %350 = vmatpush.msra.mxu0 %v229
    %351 = vmatmul.f32.gmra.mxu0 %v333
    %v352 = vpop.f32.mrf.mxu0
    %v353 = vadd.f32 0.0, %v352
    %354 = vdwg.mxu0
    %v355 = vsel %vm195, %v242, 0
    %357 = vmatpush.msra.mxu0 0.0
    %358 = vmatpush.msra.mxu0 0.0
    %359 = vmatpush.msra.mxu0 0.0
    %360 = vmatpush.msra.mxu0 0.0
    %361 = vmatpush.msra.mxu0 0.0
    %362 = vmatpush.msra.mxu0 0.0
    %363 = vmatpush.msra.mxu0 0.0
    %364 = vmatpush.msra.mxu0 0.0
    %365 = vmatpush.msra.mxu0 0.0
    %366 = vmatpush.msra.mxu0 0.0
    %367 = vmatpush.msra.mxu0 0.0
    %368 = vmatpush.msra.mxu0 0.0
    %369 = vmatpush.msra.mxu0 0.0
    %370 = vmatpush.msra.mxu0 0.0
    %371 = vmatpush.msra.mxu0 %v232
    %372 = vmatpush.msra.mxu0 %v231
    %373 = vmatmul.f32.gmra.mxu0 %v355
    %v374 = vpop.f32.mrf.mxu0
    %v375 = vadd.f32 0.0, %v374
    %376 = vdwg.mxu0
    %v377 = vsel %vm195, %v243, 0
    %379 = vmatpush.msra.mxu0 0.0
    %380 = vmatpush.msra.mxu0 0.0
    %381 = vmatpush.msra.mxu0 0.0
    %382 = vmatpush.msra.mxu0 0.0
    %383 = vmatpush.msra.mxu0 0.0
    %384 = vmatpush.msra.mxu0 0.0
    %385 = vmatpush.msra.mxu0 0.0
    %386 = vmatpush.msra.mxu0 0.0
    %387 = vmatpush.msra.mxu0 0.0
    %388 = vmatpush.msra.mxu0 0.0
    %389 = vmatpush.msra.mxu0 0.0
    %390 = vmatpush.msra.mxu0 0.0
    %391 = vmatpush.msra.mxu0 0.0
    %392 = vmatpush.msra.mxu0 0.0
    %393 = vmatpush.msra.mxu0 %v234
    %394 = vmatpush.msra.mxu0 %v233
    %395 = vmatmul.f32.gmra.mxu0 %v377
    %v396 = vpop.f32.mrf.mxu0
    %v397 = vadd.f32 0.0, %v396
    %398 = vdwg.mxu0
    %v399 = vsel %vm195, %v244, 0
    %401 = vmatpush.msra.mxu0 0.0
    %402 = vmatpush.msra.mxu0 0.0
    %403 = vmatpush.msra.mxu0 0.0
    %404 = vmatpush.msra.mxu0 0.0
    %405 = vmatpush.msra.mxu0 0.0
    %406 = vmatpush.msra.mxu0 0.0
    %407 = vmatpush.msra.mxu0 0.0
    %408 = vmatpush.msra.mxu0 0.0
    %409 = vmatpush.msra.mxu0 0.0
    %410 = vmatpush.msra.mxu0 0.0
    %411 = vmatpush.msra.mxu0 0.0
    %412 = vmatpush.msra.mxu0 0.0
    %413 = vmatpush.msra.mxu0 0.0
    %414 = vmatpush.msra.mxu0 0.0
    %415 = vmatpush.msra.mxu0 %v236
    %416 = vmatpush.msra.mxu0 %v235
    %417 = vmatmul.f32.gmra.mxu0 %v399
    %v418 = vpop.f32.mrf.mxu0
    %v419 = vadd.f32 0.0, %v418
    %420 = vdwg.mxu0
    %v421 = vld [vmem:[%s5] sm:$0xff]
    %v422 = vld [vmem:[%s5 + $0x8] sm:$0xff]
    %v423 = vld [vmem:[%s5 + $0x10] sm:$0xff]
    %v424 = vld [vmem:[%s5 + $0x18] sm:$0xff]
    %v425 = vld [vmem:[%s6] sm:$0xff]
    %v426 = vld [vmem:[%s6 + $0x8] sm:$0xff]
    %v427 = vld [vmem:[%s6 + $0x10] sm:$0xff]
    %v428 = vld [vmem:[%s6 + $0x18] sm:$0xff]
    %v437 = vrot.slane %v287, 7
    %vm438 = vcmask 1041409
    %v439 = vsel %vm438, %v437, %v265
    %v440 = vrot.slane %v309, 6
    %vm441 = vcmask 1042434
    %v442 = vsel %vm441, %v440, %v439
    %v443 = vrot.slane %v331, 5
    %vm444 = vcmask 1043459
    %v445 = vsel %vm444, %v443, %v442
    %v446 = vrot.slane %v353, 4
    %vm447 = vcmask 1044484
    %v448 = vsel %vm447, %v446, %v445
    %v449 = vrot.slane %v375, 3
    %vm450 = vcmask 1045509
    %v451 = vsel %vm450, %v449, %v448
    %v452 = vrot.slane %v397, 2
    %vm453 = vcmask 1046534
    %v454 = vsel %vm453, %v452, %v451
    %v455 = vrot.slane %v419, 1
    %vm456 = vcmask 1047559
    %v457 = vsel %vm456, %v455, %v454
    %v458 = vsel %vm145, %v457, 0
    %460 = vmatpush.msra.mxu0 0.0
    %461 = vmatpush.msra.mxu0 0.0
    %462 = vmatpush.msra.mxu0 0.0
    %463 = vmatpush.msra.mxu0 0.0
    %464 = vmatpush.msra.mxu0 0.0
    %465 = vmatpush.msra.mxu0 0.0
    %466 = vmatpush.msra.mxu0 0.0
    %467 = vmatpush.msra.mxu0 0.0
    %468 = vmatpush.msra.mxu0 0.0
    %469 = vmatpush.msra.mxu0 0.0
    %470 = vmatpush.msra.mxu0 0.0
    %471 = vmatpush.msra.mxu0 0.0
    %472 = vmatpush.msra.mxu0 %v428
    %473 = vmatpush.msra.mxu0 %v427
    %474 = vmatpush.msra.mxu0 %v426
    %475 = vmatpush.msra.mxu0 %v425
    %476 = vmatmul.f32.gmra.mxu0 %v458
    %v477 = vpop.f32.mrf.mxu0
    %v478 = vadd.f32 0.0, %v477
    %479 = vdwg.mxu0
    %480 = vmatpush.msra.mxu0 0.0
    %481 = vmatpush.msra.mxu0 0.0
    %482 = vmatpush.msra.mxu0 0.0
    %483 = vmatpush.msra.mxu0 0.0
    %484 = vmatpush.msra.mxu0 0.0
    %485 = vmatpush.msra.mxu0 0.0
    %486 = vmatpush.msra.mxu0 0.0
    %487 = vmatpush.msra.mxu0 0.0
    %488 = vmatpush.msra.mxu0 0.0
    %489 = vmatpush.msra.mxu0 0.0
    %490 = vmatpush.msra.mxu0 0.0
    %491 = vmatpush.msra.mxu0 0.0
    %492 = vmatpush.msra.mxu0 %v424
    %493 = vmatpush.msra.mxu0 %v423
    %494 = vmatpush.msra.mxu0 %v422
    %495 = vmatpush.msra.mxu0 %v421
    %496 = vmatmul.f32.gmra.mxu0 %v170
    %v497 = vpop.f32.mrf.mxu0
    %v498 = vadd.f32 %v478, %v497
    %499 = vdwg.mxu0
    %v500 = vld [vmem:[#allocation11 + $0x1] sm:$0x1]
    %v501 = vperm.slane %v500, 0
    %v502 = vadd.f32 %v498, %v501
    %v503 = vmax.f32 %v502, 0.0
    %v504 = vld [vmem:[#allocation5] sm:$0xff]
    %v505 = vld [vmem:[#allocation11 + $0x2] sm:$0x1]
    %v506 = vld [vmem:[#allocation11 + $0x3] sm:$0x1]
    %v507 = vld [vmem:[#allocation11 + $0x4] sm:$0x1]
    %v508 = vld [vmem:[#allocation11 + $0x5] sm:$0x1]
    %v509 = vld [vmem:[#allocation8] sm:$0xff]
    %v510 = vld [vmem:[#allocation8 + $0x8] sm:$0xff]
    %v511 = vld [vmem:[#allocation8 + $0x10] sm:$0xff]
    %v512 = vld [vmem:[#allocation8 + $0x18] sm:$0xff]
    %v513 = vld [vmem:[#allocation10] sm:$0xff]
    %v514 = vld [vmem:[#allocation10 + $0x8] sm:$0xff]
    %v515 = vld [vmem:[#allocation10 + $0x10] sm:$0xff]
    %v516 = vld [vmem:[#allocation10 + $0x18] sm:$0xff]
    %v518 = vsel %vm145, %v504, 0
    %520 = vmatpush.msra.mxu0 0.0
    %521 = vmatpush.msra.mxu0 0.0
    %522 = vmatpush.msra.mxu0 0.0
    %523 = vmatpush.msra.mxu0 0.0
    %524 = vmatpush.msra.mxu0 0.0
    %525 = vmatpush.msra.mxu0 0.0
    %526 = vmatpush.msra.mxu0 0.0
    %527 = vmatpush.msra.mxu0 0.0
    %528 = vmatpush.msra.mxu0 0.0
    %529 = vmatpush.msra.mxu0 0.0
    %530 = vmatpush.msra.mxu0 0.0
    %531 = vmatpush.msra.mxu0 0.0
    %532 = vmatpush.msra.mxu0 %v516
    %533 = vmatpush.msra.mxu0 %v515
    %534 = vmatpush.msra.mxu0 %v514
    %535 = vmatpush.msra.mxu0 %v513
    %536 = vmatmul.f32.gmra.mxu0 %v518
    %v537 = vpop.f32.mrf.mxu0
    %v538 = vadd.f32 0.0, %v537
    %539 = vdwg.mxu0
    %v541 = vsel %vm145, %v503, 0
    %543 = vmatpush.msra.mxu0 0.0
    %544 = vmatpush.msra.mxu0 0.0
    %545 = vmatpush.msra.mxu0 0.0
    %546 = vmatpush.msra.mxu0 0.0
    %547 = vmatpush.msra.mxu0 0.0
    %548 = vmatpush.msra.mxu0 0.0
    %549 = vmatpush.msra.mxu0 0.0
    %550 = vmatpush.msra.mxu0 0.0
    %551 = vmatpush.msra.mxu0 0.0
    %552 = vmatpush.msra.mxu0 0.0
    %553 = vmatpush.msra.mxu0 0.0
    %554 = vmatpush.msra.mxu0 0.0
    %555 = vmatpush.msra.mxu0 %v512
    %556 = vmatpush.msra.mxu0 %v511
    %557 = vmatpush.msra.mxu0 %v510
    %558 = vmatpush.msra.mxu0 %v509
    %559 = vmatmul.f32.gmra.mxu0 %v541
    %v560 = vpop.f32.mrf.mxu0
    %v561 = vadd.f32 %v538, %v560
    %562 = vdwg.mxu0
    %v563 = vperm.slane %v505, 0
    %v564 = vadd.f32 %v561, %v563
    %v565 = vxor.u32 %v564, 2147483648
    %v566 = vmul.f32 %v565, 1.442695
    %v567 = vpow.pop %v566
    %v568 = vadd.f32 %v567, 1.0
    %v569 = vrcp.pop %v568
    %v570 = vmul.f32 %v568, %v569
    %v571 = vsub.f32 1.0, %v570
    %v572 = vmul.f32 %v569, %v571
    %v573 = vadd.f32 %v569, %v572
    %vm574 = vweird.f32 %v568
    %vm575 = vweird.f32 %v569
    %vm576 = vmor %vm574, %vm575
    %v577 = vsel %vm576, %v569, %v573
    %v578 = vand.u32 2147483647, %v568
    %vm579 = vcmp.eq.f32.partialorder %v578, 8.507059e+37
    %v580 = vand.u32 %v568, 2147483648
    %v581 = vor.u32 1.1754944e-38, %v580
    %v582 = vsel %vm579, %v581, %v577
    %v583 = vmul.f32 1.0, %v582
    %s584 = scalar_lea.vmem [#allocation8], 32
    %v585 = vld [vmem:[%s584] sm:$0xff]
    %v586 = vld [vmem:[%s584 + $0x8] sm:$0xff]
    %v587 = vld [vmem:[%s584 + $0x10] sm:$0xff]
    %v588 = vld [vmem:[%s584 + $0x18] sm:$0xff]
    %s589 = scalar_lea.vmem [#allocation10], 32
    %v590 = vld [vmem:[%s589] sm:$0xff]
    %v591 = vld [vmem:[%s589 + $0x8] sm:$0xff]
    %v592 = vld [vmem:[%s589 + $0x10] sm:$0xff]
    %v593 = vld [vmem:[%s589 + $0x18] sm:$0xff]
    %594 = vmatpush.msra.mxu0 0.0
    %595 = vmatpush.msra.mxu0 0.0
    %596 = vmatpush.msra.mxu0 0.0
    %597 = vmatpush.msra.mxu0 0.0
    %598 = vmatpush.msra.mxu0 0.0
    %599 = vmatpush.msra.mxu0 0.0
    %600 = vmatpush.msra.mxu0 0.0
    %601 = vmatpush.msra.mxu0 0.0
    %602 = vmatpush.msra.mxu0 0.0
    %603 = vmatpush.msra.mxu0 0.0
    %604 = vmatpush.msra.mxu0 0.0
    %605 = vmatpush.msra.mxu0 0.0
    %606 = vmatpush.msra.mxu0 %v593
    %607 = vmatpush.msra.mxu0 %v592
    %608 = vmatpush.msra.mxu0 %v591
    %609 = vmatpush.msra.mxu0 %v590
    %610 = vmatmul.f32.gmra.mxu0 %v518
    %v611 = vpop.f32.mrf.mxu0
    %v612 = vadd.f32 0.0, %v611
    %613 = vdwg.mxu0
    %614 = vmatpush.msra.mxu0 0.0
    %615 = vmatpush.msra.mxu0 0.0
    %616 = vmatpush.msra.mxu0 0.0
    %617 = vmatpush.msra.mxu0 0.0
    %618 = vmatpush.msra.mxu0 0.0
    %619 = vmatpush.msra.mxu0 0.0
    %620 = vmatpush.msra.mxu0 0.0
    %621 = vmatpush.msra.mxu0 0.0
    %622 = vmatpush.msra.mxu0 0.0
    %623 = vmatpush.msra.mxu0 0.0
    %624 = vmatpush.msra.mxu0 0.0
    %625 = vmatpush.msra.mxu0 0.0
    %626 = vmatpush.msra.mxu0 %v588
    %627 = vmatpush.msra.mxu0 %v587
    %628 = vmatpush.msra.mxu0 %v586
    %629 = vmatpush.msra.mxu0 %v585
    %630 = vmatmul.f32.gmra.mxu0 %v541
    %v631 = vpop.f32.mrf.mxu0
    %v632 = vadd.f32 %v612, %v631
    %633 = vdwg.mxu0
    %v634 = vperm.slane %v506, 0
    %v635 = vadd.f32 %v632, %v634
    %v636 = vxor.u32 %v635, 2147483648
    %v637 = vmul.f32 %v636, 1.442695
    %v638 = vpow.pop %v637
    %v639 = vadd.f32 %v638, 1.0
    %v640 = vrcp.pop %v639
    %v641 = vmul.f32 %v639, %v640
    %v642 = vsub.f32 1.0, %v641
    %v643 = vmul.f32 %v640, %v642
    %v644 = vadd.f32 %v640, %v643
    %vm645 = vweird.f32 %v639
    %vm646 = vweird.f32 %v640
    %vm647 = vmor %vm645, %vm646
    %v648 = vsel %vm647, %v640, %v644
    %v649 = vand.u32 2147483647, %v639
    %vm650 = vcmp.eq.f32.partialorder %v649, 8.507059e+37
    %v651 = vand.u32 %v639, 2147483648
    %v652 = vor.u32 1.1754944e-38, %v651
    %v653 = vsel %vm650, %v652, %v648
    %v654 = vmul.f32 1.0, %v653
    %s655 = scalar_lea.vmem [#allocation8], 64
    %v656 = vld [vmem:[%s655] sm:$0xff]
    %v657 = vld [vmem:[%s655 + $0x8] sm:$0xff]
    %v658 = vld [vmem:[%s655 + $0x10] sm:$0xff]
    %v659 = vld [vmem:[%s655 + $0x18] sm:$0xff]
    %v660 = vperm.slane %v507, 0
    %661 = vmatpush.msra.mxu0 0.0
    %662 = vmatpush.msra.mxu0 0.0
    %663 = vmatpush.msra.mxu0 0.0
    %664 = vmatpush.msra.mxu0 0.0
    %665 = vmatpush.msra.mxu0 0.0
    %666 = vmatpush.msra.mxu0 0.0
    %667 = vmatpush.msra.mxu0 0.0
    %668 = vmatpush.msra.mxu0 0.0
    %669 = vmatpush.msra.mxu0 0.0
    %670 = vmatpush.msra.mxu0 0.0
    %671 = vmatpush.msra.mxu0 0.0
    %672 = vmatpush.msra.mxu0 0.0
    %673 = vmatpush.msra.mxu0 %v659
    %674 = vmatpush.msra.mxu0 %v658
    %675 = vmatpush.msra.mxu0 %v657
    %676 = vmatpush.msra.mxu0 %v656
    %677 = vmatmul.f32.gmra.mxu0 %v541
    %v678 = vpop.f32.mrf.mxu0
    %v679 = vadd.f32 %v660, %v678
    %680 = vdwg.mxu0
    %s681 = scalar_lea.vmem [#allocation10], 64
    %v682 = vld [vmem:[%s681] sm:$0xff]
    %v683 = vld [vmem:[%s681 + $0x8] sm:$0xff]
    %v684 = vld [vmem:[%s681 + $0x10] sm:$0xff]
    %v685 = vld [vmem:[%s681 + $0x18] sm:$0xff]
    %v686 = vperm.slane %v508, 0
    %687 = vmatpush.msra.mxu0 0.0
    %688 = vmatpush.msra.mxu0 0.0
    %689 = vmatpush.msra.mxu0 0.0
    %690 = vmatpush.msra.mxu0 0.0
    %691 = vmatpush.msra.mxu0 0.0
    %692 = vmatpush.msra.mxu0 0.0
    %693 = vmatpush.msra.mxu0 0.0
    %694 = vmatpush.msra.mxu0 0.0
    %695 = vmatpush.msra.mxu0 0.0
    %696 = vmatpush.msra.mxu0 0.0
    %697 = vmatpush.msra.mxu0 0.0
    %698 = vmatpush.msra.mxu0 0.0
    %699 = vmatpush.msra.mxu0 %v685
    %700 = vmatpush.msra.mxu0 %v684
    %701 = vmatpush.msra.mxu0 %v683
    %702 = vmatpush.msra.mxu0 %v682
    %703 = vmatmul.f32.gmra.mxu0 %v518
    %v704 = vpop.f32.mrf.mxu0
    %v705 = vadd.f32 %v686, %v704
    %706 = vdwg.mxu0
    %v707 = vmul.f32 %v583, %v705
    %v708 = vadd.f32 %v679, %v707
    %v709 = vtanh.pop %v708
    %v710 = vsub.f32 1.0, %v654
    %v711 = vmul.f32 %v710, %v709
    %v712 = vmul.f32 %v654, %v504
    %v713 = vadd.f32 %v711, %v712
    %714 = vst.msk [vmem:[#allocation14] sm:$0xff] %vm145, %v713
    %s715 = scalar_lea.vmem [#allocation5], 8
    %v716 = vld [vmem:[%s715] sm:$0xff]
    %v717 = vld [vmem:[#allocation11 + $0x6] sm:$0x1]
    %v718 = vld [vmem:[#allocation11 + $0x7] sm:$0x1]
    %v719 = vld [vmem:[#allocation11 + $0x8] sm:$0x1]
    %v720 = vld [vmem:[#allocation11 + $0x9] sm:$0x1]
    %s721 = scalar_lea.vmem [#allocation8], 96
    %v722 = vld [vmem:[%s721] sm:$0xff]
    %v723 = vld [vmem:[%s721 + $0x8] sm:$0xff]
    %v724 = vld [vmem:[%s721 + $0x10] sm:$0xff]
    %v725 = vld [vmem:[%s721 + $0x18] sm:$0xff]
    %s726 = scalar_lea.vmem [#allocation10], 96
    %v727 = vld [vmem:[%s726] sm:$0xff]
    %v728 = vld [vmem:[%s726 + $0x8] sm:$0xff]
    %v729 = vld [vmem:[%s726 + $0x10] sm:$0xff]
    %v730 = vld [vmem:[%s726 + $0x18] sm:$0xff]
    %v732 = vsel %vm145, %v716, 0
    %734 = vmatpush.msra.mxu0 0.0
    %735 = vmatpush.msra.mxu0 0.0
    %736 = vmatpush.msra.mxu0 0.0
    %737 = vmatpush.msra.mxu0 0.0
    %738 = vmatpush.msra.mxu0 0.0
    %739 = vmatpush.msra.mxu0 0.0
    %740 = vmatpush.msra.mxu0 0.0
    %741 = vmatpush.msra.mxu0 0.0
    %742 = vmatpush.msra.mxu0 0.0
    %743 = vmatpush.msra.mxu0 0.0
    %744 = vmatpush.msra.mxu0 0.0
    %745 = vmatpush.msra.mxu0 0.0
    %746 = vmatpush.msra.mxu0 %v730
    %747 = vmatpush.msra.mxu0 %v729
    %748 = vmatpush.msra.mxu0 %v728
    %749 = vmatpush.msra.mxu0 %v727
    %750 = vmatmul.f32.gmra.mxu0 %v732
    %v751 = vpop.f32.mrf.mxu0
    %v752 = vadd.f32 0.0, %v751
    %753 = vdwg.mxu0
    %v755 = vsel %vm145, %v713, 0
    %757 = vmatpush.msra.mxu0 0.0
    %758 = vmatpush.msra.mxu0 0.0
    %759 = vmatpush.msra.mxu0 0.0
    %760 = vmatpush.msra.mxu0 0.0
    %761 = vmatpush.msra.mxu0 0.0
    %762 = vmatpush.msra.mxu0 0.0
    %763 = vmatpush.msra.mxu0 0.0
    %764 = vmatpush.msra.mxu0 0.0
    %765 = vmatpush.msra.mxu0 0.0
    %766 = vmatpush.msra.mxu0 0.0
    %767 = vmatpush.msra.mxu0 0.0
    %768 = vmatpush.msra.mxu0 0.0
    %769 = vmatpush.msra.mxu0 %v725
    %770 = vmatpush.msra.mxu0 %v724
    %771 = vmatpush.msra.mxu0 %v723
    %772 = vmatpush.msra.mxu0 %v722
    %773 = vmatmul.f32.gmra.mxu0 %v755
    %v774 = vpop.f32.mrf.mxu0
    %v775 = vadd.f32 %v752, %v774
    %776 = vdwg.mxu0
    %v777 = vperm.slane %v717, 0
    %v778 = vadd.f32 %v775, %v777
    %v779 = vxor.u32 %v778, 2147483648
    %v780 = vmul.f32 %v779, 1.442695
    %v781 = vpow.pop %v780
    %v782 = vadd.f32 %v781, 1.0
    %v783 = vrcp.pop %v782
    %v784 = vmul.f32 %v782, %v783
    %v785 = vsub.f32 1.0, %v784
    %v786 = vmul.f32 %v783, %v785
    %v787 = vadd.f32 %v783, %v786
    %vm788 = vweird.f32 %v782
    %vm789 = vweird.f32 %v783
    %vm790 = vmor %vm788, %vm789
    %v791 = vsel %vm790, %v783, %v787
    %v792 = vand.u32 2147483647, %v782
    %vm793 = vcmp.eq.f32.partialorder %v792, 8.507059e+37
    %v794 = vand.u32 %v782, 2147483648
    %v795 = vor.u32 1.1754944e-38, %v794
    %v796 = vsel %vm793, %v795, %v791
    %v797 = vmul.f32 1.0, %v796
    %s798 = scalar_lea.vmem [#allocation8], 128
    %v799 = vld [vmem:[%s798] sm:$0xff]
    %v800 = vld [vmem:[%s798 + $0x8] sm:$0xff]
    %v801 = vld [vmem:[%s798 + $0x10] sm:$0xff]
    %v802 = vld [vmem:[%s798 + $0x18] sm:$0xff]
    %s803 = scalar_lea.vmem [#allocation10], 128
    %v804 = vld [vmem:[%s803] sm:$0xff]
    %v805 = vld [vmem:[%s803 + $0x8] sm:$0xff]
    %v806 = vld [vmem:[%s803 + $0x10] sm:$0xff]
    %v807 = vld [vmem:[%s803 + $0x18] sm:$0xff]
    %808 = vmatpush.msra.mxu0 0.0
    %809 = vmatpush.msra.mxu0 0.0
    %810 = vmatpush.msra.mxu0 0.0
    %811 = vmatpush.msra.mxu0 0.0
    %812 = vmatpush.msra.mxu0 0.0
    %813 = vmatpush.msra.mxu0 0.0
    %814 = vmatpush.msra.mxu0 0.0
    %815 = vmatpush.msra.mxu0 0.0
    %816 = vmatpush.msra.mxu0 0.0
    %817 = vmatpush.msra.mxu0 0.0
    %818 = vmatpush.msra.mxu0 0.0
    %819 = vmatpush.msra.mxu0 0.0
    %820 = vmatpush.msra.mxu0 %v807
    %821 = vmatpush.msra.mxu0 %v806
    %822 = vmatpush.msra.mxu0 %v805
    %823 = vmatpush.msra.mxu0 %v804
    %824 = vmatmul.f32.gmra.mxu0 %v732
    %v825 = vpop.f32.mrf.mxu0
    %v826 = vadd.f32 0.0, %v825
    %827 = vdwg.mxu0
    %828 = vmatpush.msra.mxu0 0.0
    %829 = vmatpush.msra.mxu0 0.0
    %830 = vmatpush.msra.mxu0 0.0
    %831 = vmatpush.msra.mxu0 0.0
    %832 = vmatpush.msra.mxu0 0.0
    %833 = vmatpush.msra.mxu0 0.0
    %834 = vmatpush.msra.mxu0 0.0
    %835 = vmatpush.msra.mxu0 0.0
    %836 = vmatpush.msra.mxu0 0.0
    %837 = vmatpush.msra.mxu0 0.0
    %838 = vmatpush.msra.mxu0 0.0
    %839 = vmatpush.msra.mxu0 0.0
    %840 = vmatpush.msra.mxu0 %v802
    %841 = vmatpush.msra.mxu0 %v801
    %842 = vmatpush.msra.mxu0 %v800
    %843 = vmatpush.msra.mxu0 %v799
    %844 = vmatmul.f32.gmra.mxu0 %v755
    %v845 = vpop.f32.mrf.mxu0
    %v846 = vadd.f32 %v826, %v845
    %847 = vdwg.mxu0
    %v848 = vperm.slane %v718, 0
    %v849 = vadd.f32 %v846, %v848
    %v850 = vxor.u32 %v849, 2147483648
    %v851 = vmul.f32 %v850, 1.442695
    %v852 = vpow.pop %v851
    %v853 = vadd.f32 %v852, 1.0
    %v854 = vrcp.pop %v853
    %v855 = vmul.f32 %v853, %v854
    %v856 = vsub.f32 1.0, %v855
    %v857 = vmul.f32 %v854, %v856
    %v858 = vadd.f32 %v854, %v857
    %vm859 = vweird.f32 %v853
    %vm860 = vweird.f32 %v854
    %vm861 = vmor %vm859, %vm860
    %v862 = vsel %vm861, %v854, %v858
    %v863 = vand.u32 2147483647, %v853
    %vm864 = vcmp.eq.f32.partialorder %v863, 8.507059e+37
    %v865 = vand.u32 %v853, 2147483648
    %v866 = vor.u32 1.1754944e-38, %v865
    %v867 = vsel %vm864, %v866, %v862
    %v868 = vmul.f32 1.0, %v867
    %s869 = scalar_lea.vmem [#allocation8], 160
    %v870 = vld [vmem:[%s869] sm:$0xff]
    %v871 = vld [vmem:[%s869 + $0x8] sm:$0xff]
    %v872 = vld [vmem:[%s869 + $0x10] sm:$0xff]
    %v873 = vld [vmem:[%s869 + $0x18] sm:$0xff]
    %v874 = vperm.slane %v719, 0
    %875 = vmatpush.msra.mxu0 0.0
    %876 = vmatpush.msra.mxu0 0.0
    %877 = vmatpush.msra.mxu0 0.0
    %878 = vmatpush.msra.mxu0 0.0
    %879 = vmatpush.msra.mxu0 0.0
    %880 = vmatpush.msra.mxu0 0.0
    %881 = vmatpush.msra.mxu0 0.0
    %882 = vmatpush.msra.mxu0 0.0
    %883 = vmatpush.msra.mxu0 0.0
    %884 = vmatpush.msra.mxu0 0.0
    %885 = vmatpush.msra.mxu0 0.0
    %886 = vmatpush.msra.mxu0 0.0
    %887 = vmatpush.msra.mxu0 %v873
    %888 = vmatpush.msra.mxu0 %v872
    %889 = vmatpush.msra.mxu0 %v871
    %890 = vmatpush.msra.mxu0 %v870
    %891 = vmatmul.f32.gmra.mxu0 %v755
    %v892 = vpop.f32.mrf.mxu0
    %v893 = vadd.f32 %v874, %v892
    %894 = vdwg.mxu0
    %s895 = scalar_lea.vmem [#allocation10], 160
    %v896 = vld [vmem:[%s895] sm:$0xff]
    %v897 = vld [vmem:[%s895 + $0x8] sm:$0xff]
    %v898 = vld [vmem:[%s895 + $0x10] sm:$0xff]
    %v899 = vld [vmem:[%s895 + $0x18] sm:$0xff]
    %v900 = vperm.slane %v720, 0
    %901 = vmatpush.msra.mxu0 0.0
    %902 = vmatpush.msra.mxu0 0.0
    %903 = vmatpush.msra.mxu0 0.0
    %904 = vmatpush.msra.mxu0 0.0
    %905 = vmatpush.msra.mxu0 0.0
    %906 = vmatpush.msra.mxu0 0.0
    %907 = vmatpush.msra.mxu0 0.0
    %908 = vmatpush.msra.mxu0 0.0
    %909 = vmatpush.msra.mxu0 0.0
    %910 = vmatpush.msra.mxu0 0.0
    %911 = vmatpush.msra.mxu0 0.0
    %912 = vmatpush.msra.mxu0 0.0
    %913 = vmatpush.msra.mxu0 %v899
    %914 = vmatpush.msra.mxu0 %v898
    %915 = vmatpush.msra.mxu0 %v897
    %916 = vmatpush.msra.mxu0 %v896
    %917 = vmatmul.f32.gmra.mxu0 %v732
    %v918 = vpop.f32.mrf.mxu0
    %v919 = vadd.f32 %v900, %v918
    %920 = vdwg.mxu0
    %v921 = vmul.f32 %v797, %v919
    %v922 = vadd.f32 %v893, %v921
    %v923 = vtanh.pop %v922
    %v924 = vsub.f32 1.0, %v868
    %v925 = vmul.f32 %v924, %v923
    %v926 = vmul.f32 %v868, %v716
    %v927 = vadd.f32 %v925, %v926
    %s928 = scalar_lea.vmem [#allocation14], 8
    %929 = vst.msk [vmem:[%s928] sm:$0xff] %vm145, %v927
    %v930 = vld [vmem:[%s10] sm:$0xff]
    %v931 = vld [vmem:[%s10 + $0x8] sm:$0xff]
    %v932 = vld [vmem:[%s10 + $0x10] sm:$0xff]
    %v933 = vld [vmem:[%s10 + $0x18] sm:$0xff]
    %v934 = vld [vmem:[#allocation11 + $0xa] sm:$0x1]
    %v935 = vperm.slane %v934, 0
    %v937 = vsel %vm145, %v927, 0
    %939 = vmatpush.msra.mxu0 0.0
    %940 = vmatpush.msra.mxu0 0.0
    %941 = vmatpush.msra.mxu0 0.0
    %942 = vmatpush.msra.mxu0 0.0
    %943 = vmatpush.msra.mxu0 0.0
    %944 = vmatpush.msra.mxu0 0.0
    %945 = vmatpush.msra.mxu0 0.0
    %946 = vmatpush.msra.mxu0 0.0
    %947 = vmatpush.msra.mxu0 0.0
    %948 = vmatpush.msra.mxu0 0.0
    %949 = vmatpush.msra.mxu0 0.0
    %950 = vmatpush.msra.mxu0 0.0
    %951 = vmatpush.msra.mxu0 %v933
    %952 = vmatpush.msra.mxu0 %v932
    %953 = vmatpush.msra.mxu0 %v931
    %954 = vmatpush.msra.mxu0 %v930
    %955 = vmatmul.f32.gmra.mxu0 %v937
    %v956 = vpop.f32.mrf.mxu0
    %v957 = vadd.f32 %v935, %v956
    %958 = vdwg.mxu0
    %vm959 = vcmask 523264
    %v960 = vsel %vm959, %v957, -inf
    %961 = vmax.xlane.f32.xlu0 %v960
    %v962 = vpop.xlane.xlu0 %961
    %v963 = vsub.f32 %v957, %v962
    %v964 = vmul.f32 %v963, 1.442695
    %v965 = vpow.pop %v964
    %v966 = vsel %vm959, %v965, 0.0
    %967 = vadd.xlane.f32.xlu0 %v966
    %v968 = vpop.xlane.xlu0 %967
    %v969 = vlog2.pop %v968
    %v970 = vmul.f32 %v969, 0.6931472
    %v971 = vsub.f32 %v963, %v970
    %972 = vst.msk [vmem:[#allocation13] sm:$0xff] %vm959, %v971
    // Predicated region
    $region70: #{tpu_custom_call.1} parent=1 // pred_check
      _
    $region71: #{tpu_custom_call.1} parent=1 // pred_check_branch
      %974 = sbr.rel (0) target = $region73
    $region72: #{tpu_custom_call.1} parent=1 // pred_region
      %976 = vsyncadd [#allocation4], 0
      %s978 = sshll.u32 [#allocation13], 4
      %s979 = int_to_ptr.vmem [resolvable:$true] %s978
      %s980 = sshll.u32 %s11, 4
      %s981 = int_to_ptr.hbm [resolvable:$true] %s980
      %983 = dma.vmem_to_hbm [thread:$0]  %s979, 128, %s981, [#allocation4]
    $region73: #{tpu_custom_call.1} parent=1 // pred_fallthru
      _
    // Predicated region
    $region74: #{tpu_custom_call.1} parent=1 // pred_check
      _
    $region75: #{tpu_custom_call.1} parent=1 // pred_check_branch
      %985 = sbr.rel (0) target = $region77
    $region76: #{tpu_custom_call.1} parent=1 // pred_region
      %987 = vsyncadd [#allocation15], 0
      %s988 = sshll.u32 [#allocation14], 4
      %s989 = int_to_ptr.vmem [resolvable:$true] %s988
      %s990 = sshll.u32 %s12, 4
      %s991 = int_to_ptr.hbm [resolvable:$true] %s990
      %996 = dma.vmem_to_hbm [thread:$0]  %s989, 256, %s991, [#allocation15], 128, 128, 8
    $region77: #{tpu_custom_call.1} parent=1 // pred_fallthru
      _
    // Predicated region
    $region78: #{tpu_custom_call.1} parent=1 // pred_check
      _
    $region79: #{tpu_custom_call.1} parent=1 // pred_check_branch
      %998 = sbr.rel (0) target = $region81
    $region80: #{tpu_custom_call.1} parent=1 // pred_region
      %1000 = vsyncadd [#allocation15], 0
      %s1002 = sshll.u32 [#allocation16], 4
      %s1003 = int_to_ptr.vmem [resolvable:$true] %s1002
      %s1004 = sshll.u32 %s13, 4
      %s1005 = int_to_ptr.hbm [resolvable:$true] %s1004
      %1007 = dma.vmem_to_hbm [thread:$0]  %s1003, 128, %s1005, [#allocation15]
    $region81: #{tpu_custom_call.1} parent=1 // pred_fallthru
      _
    // Predicated region
    $region82: #{tpu_custom_call.1} parent=1 // pred_check
      _
    $region83: #{tpu_custom_call.1} parent=1 // pred_check_branch
      %1009 = sbr.rel (0) target = $region85
    $region84: #{tpu_custom_call.1} parent=1 // pred_region
      %1011 = dma.done [#allocation4], 128
    $region85: #{tpu_custom_call.1} parent=1 // pred_fallthru
      _
    // Predicated region
    $region86: #{tpu_custom_call.1} parent=1 // pred_check
      _
    $region87: #{tpu_custom_call.1} parent=1 // pred_check_branch
      %1013 = sbr.rel (0) target = $region89
    $region88: #{tpu_custom_call.1} parent=1 // pred_region
      %1015 = dma.done [#allocation15], 256
    $region89: #{tpu_custom_call.1} parent=1 // pred_fallthru
      _
    // Predicated region
    $region90: #{tpu_custom_call.1} parent=1 // pred_check
      _
    $region91: #{tpu_custom_call.1} parent=1 // pred_check_branch
      %1017 = sbr.rel (0) target = $region93
    $region92: #{tpu_custom_call.1} parent=1 // pred_region
      %1019 = dma.done [#allocation15], 128
    $region93: #{tpu_custom_call.1} parent=1 // pred_fallthru
      _
    %1020 = vsyncpa [#allocation3], 1
    %1021 = vsyncpa [#allocation6], 1
    %1022 = vsyncpa [#allocation9], 1
    %1023 = vsyncpa [#allocation12], 1
    %1024 = vsyncpa [#allocation4], 1
    %1025 = vsyncpa [#allocation15], 1

</llo_original>
